<compile_context>
chip_gen: v5e
topology: v5e:2x2
jax: 0.10.0
libtpu: 0.0.40
codegen_flags: <defaults>
</compile_context>

<pallas_src>
import functools

import jax
import jax.numpy as jnp
from jax.experimental import pallas as pl
from jax.experimental.pallas import tpu as pltpu


# --------------------- fused stacked-LSTM + FC kernel -------------------------
def _make_fused_kernel(num_layers, Bblk, T, H):
    fourH = 4 * H

    def kernel(*refs):
        # inputs:  xw0, w_hh_t[0..L-1], (w_ih_t, b)[1..L-1], fc_w_t_pad, fc_b_pad
        # output:  logits_pad (Bblk, T, Vp)
        xw0_ref = refs[0]
        whh_refs = refs[1:1 + num_layers]
        proj_refs = refs[1 + num_layers:3 * num_layers - 1]
        fcw_ref, fcb_ref, out_ref = refs[3 * num_layers - 1:]

        def recurrence(xw_btg, whh):
            # xw_btg: (Bblk, T, 4H) register value = x @ W_ih + b (hoisted).
            # h/c stay in vregs across the fully unrolled time loop; the hidden
            # sequence is accumulated in registers and stacked once per layer.
            h = jnp.zeros((Bblk, H), jnp.float32)
            c = jnp.zeros((Bblk, H), jnp.float32)
            hs = []
            for t in range(T):                        # static unroll; t compile-time
                gates = xw_btg[:, t, :] + jnp.dot(
                    h, whh, preferred_element_type=jnp.float32)
                # One full-width sigmoid covers i/f/o (single EUP push) + 2 tanh.
                sig = jax.nn.sigmoid(gates)
                i_g = sig[:, 0 * H:1 * H]
                f_g = sig[:, 1 * H:2 * H]
                o_g = sig[:, 3 * H:4 * H]
                g_g = jnp.tanh(gates[:, 2 * H:3 * H])
                c = f_g * c + i_g * g_g
                h = o_g * jnp.tanh(c)
                hs.append(h)
            return jnp.stack(hs, axis=1)              # (Bblk, T, H), registers

        # TODO(synk): if B/T/H ever scale up, tile the hoisted projection /
        # hidden sequence over T chunks (pltpu.emit_pipeline) and re-check vreg
        # pressure of the hoisted W_hh; at this config everything fits in vregs.
        hseq = recurrence(xw0_ref[...], whh_refs[0][...])
        for layer in range(1, num_layers):
            wih_ref = proj_refs[2 * (layer - 1)]
            b_ref = proj_refs[2 * (layer - 1) + 1]
            xw = (jnp.dot(hseq.reshape(Bblk * T, H), wih_ref[...],
                          preferred_element_type=jnp.float32) + b_ref[...])
            hseq = recurrence(xw.reshape(Bblk, T, fourH), whh_refs[layer][...])

        # FC head on the whole (Bblk*T, H) slab; Vp is lane-dense (mult of 128).
        logits = (jnp.dot(hseq.reshape(Bblk * T, H), fcw_ref[...],
                          preferred_element_type=jnp.float32) + fcb_ref[...])
        out_ref[...] = logits.reshape(Bblk, T, -1)

    return kernel


def fused_lstm_fc(xw0, params, num_layers, num_batch_blocks):
    """xw0: (B, T, 4H) f32 = gathered layer-0 input projection (bias folded).
    Returns padded logits (B, T, Vp) f32."""
    B, T, fourH = xw0.shape
    H = fourH // 4
    Vp = params["fc_w_t_pad"].shape[1]
    if B % num_batch_blocks != 0:
        num_batch_blocks = 1
    Bblk = B // num_batch_blocks

    flat_inputs = [xw0]
    in_specs = [pl.BlockSpec((Bblk, T, fourH), lambda i: (i, 0, 0))]
    for lp in params["lstm"]:
        flat_inputs.append(lp["w_hh_t"])
        in_specs.append(pl.BlockSpec((H, fourH), lambda i: (0, 0)))
    for lp in params["lstm"][1:]:                     # layer-0 W_ih/b folded offline
        flat_inputs += [lp["w_ih_t"], lp["b"]]
        in_specs += [pl.BlockSpec((H, fourH), lambda i: (0, 0)),
                     pl.BlockSpec((1, fourH), lambda i: (0, 0))]
    flat_inputs += [params["fc_w_t_pad"], params["fc_b_pad"]]
    in_specs += [pl.BlockSpec((H, Vp), lambda i: (0, 0)),
                 pl.BlockSpec((1, Vp), lambda i: (0, 0))]

    kernel = _make_fused_kernel(num_layers, Bblk, T, H)
    return pl.pallas_call(
        kernel,
        out_shape=jax.ShapeDtypeStruct((B, T, Vp), jnp.float32),
        grid_spec=pltpu.PrefetchScalarGridSpec(
            num_scalar_prefetch=0,
            grid=(num_batch_blocks,),        # >1 only on multi-TC chips (v7x)
            in_specs=in_specs,
            out_specs=pl.BlockSpec((Bblk, T, Vp), lambda i: (i, 0, 0)),
        ),
        compiler_params=pltpu.CompilerParams(
            dimension_semantics=("parallel",),
        ),
    )(*flat_inputs)


# ------------------------------- Full model -----------------------------------
def _default_batch_blocks(batch):
    """Split the batch across TensorCores only on multi-TC chips (v7x-class);
    on v5e/v6e the grid is a serial loop on one TC, so keep a single program."""
    try:
        kind = jax.devices()[0].device_kind.lower()
    except Exception:
        return 1
    if ("v7" in kind or "7x" in kind) and batch % 2 == 0:
        return 2
    return 1


def model_forward(x_tokens, params, num_layers, num_batch_blocks=1):
    """x_tokens: (B, T) int32. Returns logits (B, T, V)."""
    # Embedding gather fused with layer-0's input projection via the offline
    # folded table (exact: gather commutes with the row-wise matmul).
    xw0 = jnp.take(params["lstm0_table"], x_tokens, axis=0)      # (B, T, 4H)
    logits_pad = fused_lstm_fc(xw0, params, num_layers, num_batch_blocks)
    V = params["fc_b"].shape[-1]
    return logits_pad[:, :, :V]


# ------------------------------- Reference (pure JAX) -------------------------
def _reference_forward(x_tokens, params, num_layers):
    embed = jnp.take(params["embedding"], x_tokens, axis=0)
    x = embed.astype(jnp.float32)  # (B, T, E)
    B, T, _ = x.shape
    for layer in range(num_layers):
        lp = params["lstm"][layer]
        Hh = lp["w_hh_t"].shape[0]

        def step(carry, x_t, lp=lp, Hh=Hh):
            h, c = carry
            gates = x_t @ lp["w_ih_t"] + h @ lp["w_hh_t"] + lp["b"]
            i = jax.nn.sigmoid(gates[:, 0 * Hh:1 * Hh])
            f = jax.nn.sigmoid(gates[:, 1 * Hh:2 * Hh])
            g = jnp.tanh(gates[:, 2 * Hh:3 * Hh])
            o = jax.nn.sigmoid(gates[:, 3 * Hh:4 * Hh])
            c = f * c + i * g
            h = o * jnp.tanh(c)
            return (h, c), h

        h0 = jnp.zeros((B, Hh), jnp.float32)
        (_, _), ys = jax.lax.scan(step, (h0, h0), jnp.transpose(x, (1, 0, 2)))
        x = jnp.transpose(ys, (1, 0, 2))
    return x @ params["fc_w_t"] + params["fc_b"]


# ------------------------------- Param init ------------------------------------
def init_params(key, n_vocab, emb_dim, n_hidden, num_layers):
    V = n_vocab + 1
    Vp = ((V + 127) // 128) * 128           # lane-dense padded vocab for the kernel
    keys = jax.random.split(key, 2 + 4 * num_layers + 2)
    k = iter(keys)
    params = {}
    params["embedding"] = jax.random.normal(next(k), (V, emb_dim), jnp.float32)
    scale = 1.0 / jnp.sqrt(jnp.float32(n_hidden))
    lstm_params = []
    in_dim = emb_dim
    for _ in range(num_layers):
        w_ih = jax.random.uniform(next(k), (4 * n_hidden, in_dim), jnp.float32,
                                  -scale, scale)
        w_hh = jax.random.uniform(next(k), (4 * n_hidden, n_hidden), jnp.float32,
                                  -scale, scale)
        b_ih = jax.random.uniform(next(k), (4 * n_hidden,), jnp.float32,
                                  -scale, scale)
        b_hh = jax.random.uniform(next(k), (4 * n_hidden,), jnp.float32,
                                  -scale, scale)
        lstm_params.append({
            "w_ih_t": w_ih.T,                       # (in_dim, 4H)
            "w_hh_t": w_hh.T,                       # (H, 4H)
            "b": (b_ih + b_hh)[None, :],            # (1, 4H)
        })
        in_dim = n_hidden
    params["lstm"] = lstm_params
    # Layer-0 input projection folded into the embedding table (V, 4H).
    params["lstm0_table"] = (params["embedding"] @ lstm_params[0]["w_ih_t"]
                             + lstm_params[0]["b"])
    fc_scale = 1.0 / jnp.sqrt(jnp.float32(n_hidden))
    fc_w = jax.random.uniform(next(k), (V, n_hidden), jnp.float32,
                              -fc_scale, fc_scale)
    fc_b = jax.random.uniform(next(k), (V,), jnp.float32, -fc_scale, fc_scale)
    params["fc_w_t"] = fc_w.T                        # (H, V)   (reference)
    params["fc_b"] = fc_b[None, :]                   # (1, V)   (reference)
    params["fc_w_t_pad"] = jnp.zeros((n_hidden, Vp), jnp.float32).at[:, :V].set(fc_w.T)
    params["fc_b_pad"] = jnp.zeros((1, Vp), jnp.float32).at[:, :V].set(fc_b[None, :])
    return params


if __name__ == "__main__":
    # Model config (args of the PyTorch module)
    N_VOCAB = 16
    ARGS = {"EMB_DIM": 32, "N_HIDDEN": 32, "NUM_LAYERS": 2}
    B, T = 2, 8

    key = jax.random.PRNGKey(0)
    pkey, xkey = jax.random.split(key)
    params = init_params(pkey, N_VOCAB, ARGS["EMB_DIM"], ARGS["N_HIDDEN"],
                         ARGS["NUM_LAYERS"])
    x_tokens = jax.random.randint(xkey, (B, T), 0, N_VOCAB + 1, jnp.int32)

    nbb = _default_batch_blocks(B)       # 2 on v7x-class (2 TCs), else 1
    fwd = jax.jit(functools.partial(model_forward, num_layers=ARGS["NUM_LAYERS"],
                                    num_batch_blocks=nbb))
    logits = fwd(x_tokens, params)
    jax.block_until_ready(logits)

    ref = _reference_forward(x_tokens, params, ARGS["NUM_LAYERS"])
    assert logits.shape == (B, T, N_VOCAB + 1), logits.shape
    assert jnp.allclose(logits, ref, rtol=1e-4, atol=1e-4), "mismatch vs reference"

    print("KERNEL_OK")
</pallas_src>

<mosaic_0001>
module attributes {stable_mosaic.version = 11 : i64} {
  func.func @kernel(%arg0: i32, %arg1: memref<2x8x128xf32, #tpu.memory_space<vmem>>, %arg2: memref<32x128xf32, #tpu.memory_space<vmem>>, %arg3: memref<32x128xf32, #tpu.memory_space<vmem>>, %arg4: memref<32x128xf32, #tpu.memory_space<vmem>>, %arg5: memref<1x128xf32, #tpu.memory_space<vmem>>, %arg6: memref<32x128xf32, #tpu.memory_space<vmem>>, %arg7: memref<1x128xf32, #tpu.memory_space<vmem>>, %arg8: memref<2x8x128xf32, #tpu.memory_space<vmem>>) attributes {dimension_semantics = [#tpu.dimension_semantics<parallel>], iteration_bounds = array<i64: 1>, scalar_prefetch = 0 : i64, scratch_operands = 0 : i64, tpu.core_type = #tpu.core_type<tc>, window_params = [{transform_indices = @transform_0, window_bounds = array<i64: 2, 8, 128>}, {pipeline_mode = #tpu.pipeline_mode<synchronous>, transform_indices = @transform_1, window_bounds = array<i64: 32, 128>}, {pipeline_mode = #tpu.pipeline_mode<synchronous>, transform_indices = @transform_2, window_bounds = array<i64: 32, 128>}, {pipeline_mode = #tpu.pipeline_mode<synchronous>, transform_indices = @transform_3, window_bounds = array<i64: 32, 128>}, {pipeline_mode = #tpu.pipeline_mode<synchronous>, transform_indices = @transform_4, window_bounds = array<i64: 1, 128>}, {pipeline_mode = #tpu.pipeline_mode<synchronous>, transform_indices = @transform_5, window_bounds = array<i64: 32, 128>}, {pipeline_mode = #tpu.pipeline_mode<synchronous>, transform_indices = @transform_6, window_bounds = array<i64: 1, 128>}, {transform_indices = @transform_7, window_bounds = array<i64: 2, 8, 128>}]} {
    %c0 = arith.constant 0 : index
    %c0_0 = arith.constant 0 : index
    %c0_1 = arith.constant 0 : index
    %0 = vector.load %arg1[%c0, %c0_0, %c0_1] : memref<2x8x128xf32, #tpu.memory_space<vmem>>, vector<2x8x128xf32>
    %c0_2 = arith.constant 0 : index
    %c0_3 = arith.constant 0 : index
    %1 = vector.load %arg2[%c0_2, %c0_3] : memref<32x128xf32, #tpu.memory_space<vmem>>, vector<32x128xf32>
    %cst = arith.constant 0.000000e+00 : f32
    %2 = vector.broadcast %cst : f32 to vector<2x32xf32>
    %cst_4 = arith.constant 0.000000e+00 : f32
    %3 = vector.broadcast %cst_4 : f32 to vector<2x32xf32>
    %4 = vector.extract_strided_slice %0 {offsets = [0, 0, 0], sizes = [2, 1, 128], strides = [1, 1, 1]} : vector<2x8x128xf32> to vector<2x1x128xf32>
    %5 = vector.shape_cast %4 : vector<2x1x128xf32> to vector<2x128xf32>
    %cst_5 = arith.constant dense<0.000000e+00> : vector<2x128xf32>
    %6 = tpu.matmul %2, %1, %cst_5 {dimension_numbers = #tpu.dot_dimension_numbers<[1], [0], [0], [1], [0, 0, 1, 1], [], []>} : vector<2x32xf32>, vector<32x128xf32>, vector<2x128xf32> -> vector<2x128xf32>
    %7 = arith.addf %5, %6 : vector<2x128xf32>
    %8 = arith.negf %7 : vector<2x128xf32>
    %9 = math.exp %8 : vector<2x128xf32>
    %cst_6 = arith.constant 1.000000e+00 : f32
    %10 = vector.broadcast %cst_6 : f32 to vector<2x128xf32>
    %11 = arith.addf %10, %9 : vector<2x128xf32>
    %12 = arith.divf %10, %11 : vector<2x128xf32>
    %13 = vector.extract_strided_slice %12 {offsets = [0, 0], sizes = [2, 32], strides = [1, 1]} : vector<2x128xf32> to vector<2x32xf32>
    %14 = vector.extract_strided_slice %12 {offsets = [0, 32], sizes = [2, 32], strides = [1, 1]} : vector<2x128xf32> to vector<2x32xf32>
    %15 = vector.extract_strided_slice %12 {offsets = [0, 96], sizes = [2, 32], strides = [1, 1]} : vector<2x128xf32> to vector<2x32xf32>
    %16 = vector.extract_strided_slice %7 {offsets = [0, 64], sizes = [2, 32], strides = [1, 1]} : vector<2x128xf32> to vector<2x32xf32>
    %17 = math.tanh %16 : vector<2x32xf32>
    %18 = arith.mulf %14, %3 : vector<2x32xf32>
    %19 = arith.mulf %13, %17 : vector<2x32xf32>
    %20 = arith.addf %18, %19 : vector<2x32xf32>
    %21 = math.tanh %20 : vector<2x32xf32>
    %22 = arith.mulf %15, %21 : vector<2x32xf32>
    %23 = vector.extract_strided_slice %0 {offsets = [0, 1, 0], sizes = [2, 1, 128], strides = [1, 1, 1]} : vector<2x8x128xf32> to vector<2x1x128xf32>
    %24 = vector.shape_cast %23 : vector<2x1x128xf32> to vector<2x128xf32>
    %cst_7 = arith.constant dense<0.000000e+00> : vector<2x128xf32>
    %25 = tpu.matmul %22, %1, %cst_7 {dimension_numbers = #tpu.dot_dimension_numbers<[1], [0], [0], [1], [0, 0, 1, 1], [], []>} : vector<2x32xf32>, vector<32x128xf32>, vector<2x128xf32> -> vector<2x128xf32>
    %26 = arith.addf %24, %25 : vector<2x128xf32>
    %27 = arith.negf %26 : vector<2x128xf32>
    %28 = math.exp %27 : vector<2x128xf32>
    %cst_8 = arith.constant 1.000000e+00 : f32
    %29 = vector.broadcast %cst_8 : f32 to vector<2x128xf32>
    %30 = arith.addf %29, %28 : vector<2x128xf32>
    %31 = arith.divf %29, %30 : vector<2x128xf32>
    %32 = vector.extract_strided_slice %31 {offsets = [0, 0], sizes = [2, 32], strides = [1, 1]} : vector<2x128xf32> to vector<2x32xf32>
    %33 = vector.extract_strided_slice %31 {offsets = [0, 32], sizes = [2, 32], strides = [1, 1]} : vector<2x128xf32> to vector<2x32xf32>
    %34 = vector.extract_strided_slice %31 {offsets = [0, 96], sizes = [2, 32], strides = [1, 1]} : vector<2x128xf32> to vector<2x32xf32>
    %35 = vector.extract_strided_slice %26 {offsets = [0, 64], sizes = [2, 32], strides = [1, 1]} : vector<2x128xf32> to vector<2x32xf32>
    %36 = math.tanh %35 : vector<2x32xf32>
    %37 = arith.mulf %33, %20 : vector<2x32xf32>
    %38 = arith.mulf %32, %36 : vector<2x32xf32>
    %39 = arith.addf %37, %38 : vector<2x32xf32>
    %40 = math.tanh %39 : vector<2x32xf32>
    %41 = arith.mulf %34, %40 : vector<2x32xf32>
    %42 = vector.extract_strided_slice %0 {offsets = [0, 2, 0], sizes = [2, 1, 128], strides = [1, 1, 1]} : vector<2x8x128xf32> to vector<2x1x128xf32>
    %43 = vector.shape_cast %42 : vector<2x1x128xf32> to vector<2x128xf32>
    %cst_9 = arith.constant dense<0.000000e+00> : vector<2x128xf32>
    %44 = tpu.matmul %41, %1, %cst_9 {dimension_numbers = #tpu.dot_dimension_numbers<[1], [0], [0], [1], [0, 0, 1, 1], [], []>} : vector<2x32xf32>, vector<32x128xf32>, vector<2x128xf32> -> vector<2x128xf32>
    %45 = arith.addf %43, %44 : vector<2x128xf32>
    %46 = arith.negf %45 : vector<2x128xf32>
    %47 = math.exp %46 : vector<2x128xf32>
    %cst_10 = arith.constant 1.000000e+00 : f32
    %48 = vector.broadcast %cst_10 : f32 to vector<2x128xf32>
    %49 = arith.addf %48, %47 : vector<2x128xf32>
    %50 = arith.divf %48, %49 : vector<2x128xf32>
    %51 = vector.extract_strided_slice %50 {offsets = [0, 0], sizes = [2, 32], strides = [1, 1]} : vector<2x128xf32> to vector<2x32xf32>
    %52 = vector.extract_strided_slice %50 {offsets = [0, 32], sizes = [2, 32], strides = [1, 1]} : vector<2x128xf32> to vector<2x32xf32>
    %53 = vector.extract_strided_slice %50 {offsets = [0, 96], sizes = [2, 32], strides = [1, 1]} : vector<2x128xf32> to vector<2x32xf32>
    %54 = vector.extract_strided_slice %45 {offsets = [0, 64], sizes = [2, 32], strides = [1, 1]} : vector<2x128xf32> to vector<2x32xf32>
    %55 = math.tanh %54 : vector<2x32xf32>
    %56 = arith.mulf %52, %39 : vector<2x32xf32>
    %57 = arith.mulf %51, %55 : vector<2x32xf32>
    %58 = arith.addf %56, %57 : vector<2x32xf32>
    %59 = math.tanh %58 : vector<2x32xf32>
    %60 = arith.mulf %53, %59 : vector<2x32xf32>
    %61 = vector.extract_strided_slice %0 {offsets = [0, 3, 0], sizes = [2, 1, 128], strides = [1, 1, 1]} : vector<2x8x128xf32> to vector<2x1x128xf32>
    %62 = vector.shape_cast %61 : vector<2x1x128xf32> to vector<2x128xf32>
    %cst_11 = arith.constant dense<0.000000e+00> : vector<2x128xf32>
    %63 = tpu.matmul %60, %1, %cst_11 {dimension_numbers = #tpu.dot_dimension_numbers<[1], [0], [0], [1], [0, 0, 1, 1], [], []>} : vector<2x32xf32>, vector<32x128xf32>, vector<2x128xf32> -> vector<2x128xf32>
    %64 = arith.addf %62, %63 : vector<2x128xf32>
    %65 = arith.negf %64 : vector<2x128xf32>
    %66 = math.exp %65 : vector<2x128xf32>
    %cst_12 = arith.constant 1.000000e+00 : f32
    %67 = vector.broadcast %cst_12 : f32 to vector<2x128xf32>
    %68 = arith.addf %67, %66 : vector<2x128xf32>
    %69 = arith.divf %67, %68 : vector<2x128xf32>
    %70 = vector.extract_strided_slice %69 {offsets = [0, 0], sizes = [2, 32], strides = [1, 1]} : vector<2x128xf32> to vector<2x32xf32>
    %71 = vector.extract_strided_slice %69 {offsets = [0, 32], sizes = [2, 32], strides = [1, 1]} : vector<2x128xf32> to vector<2x32xf32>
    %72 = vector.extract_strided_slice %69 {offsets = [0, 96], sizes = [2, 32], strides = [1, 1]} : vector<2x128xf32> to vector<2x32xf32>
    %73 = vector.extract_strided_slice %64 {offsets = [0, 64], sizes = [2, 32], strides = [1, 1]} : vector<2x128xf32> to vector<2x32xf32>
    %74 = math.tanh %73 : vector<2x32xf32>
    %75 = arith.mulf %71, %58 : vector<2x32xf32>
    %76 = arith.mulf %70, %74 : vector<2x32xf32>
    %77 = arith.addf %75, %76 : vector<2x32xf32>
    %78 = math.tanh %77 : vector<2x32xf32>
    %79 = arith.mulf %72, %78 : vector<2x32xf32>
    %80 = vector.extract_strided_slice %0 {offsets = [0, 4, 0], sizes = [2, 1, 128], strides = [1, 1, 1]} : vector<2x8x128xf32> to vector<2x1x128xf32>
    %81 = vector.shape_cast %80 : vector<2x1x128xf32> to vector<2x128xf32>
    %cst_13 = arith.constant dense<0.000000e+00> : vector<2x128xf32>
    %82 = tpu.matmul %79, %1, %cst_13 {dimension_numbers = #tpu.dot_dimension_numbers<[1], [0], [0], [1], [0, 0, 1, 1], [], []>} : vector<2x32xf32>, vector<32x128xf32>, vector<2x128xf32> -> vector<2x128xf32>
    %83 = arith.addf %81, %82 : vector<2x128xf32>
    %84 = arith.negf %83 : vector<2x128xf32>
    %85 = math.exp %84 : vector<2x128xf32>
    %cst_14 = arith.constant 1.000000e+00 : f32
    %86 = vector.broadcast %cst_14 : f32 to vector<2x128xf32>
    %87 = arith.addf %86, %85 : vector<2x128xf32>
    %88 = arith.divf %86, %87 : vector<2x128xf32>
    %89 = vector.extract_strided_slice %88 {offsets = [0, 0], sizes = [2, 32], strides = [1, 1]} : vector<2x128xf32> to vector<2x32xf32>
    %90 = vector.extract_strided_slice %88 {offsets = [0, 32], sizes = [2, 32], strides = [1, 1]} : vector<2x128xf32> to vector<2x32xf32>
    %91 = vector.extract_strided_slice %88 {offsets = [0, 96], sizes = [2, 32], strides = [1, 1]} : vector<2x128xf32> to vector<2x32xf32>
    %92 = vector.extract_strided_slice %83 {offsets = [0, 64], sizes = [2, 32], strides = [1, 1]} : vector<2x128xf32> to vector<2x32xf32>
    %93 = math.tanh %92 : vector<2x32xf32>
    %94 = arith.mulf %90, %77 : vector<2x32xf32>
    %95 = arith.mulf %89, %93 : vector<2x32xf32>
    %96 = arith.addf %94, %95 : vector<2x32xf32>
    %97 = math.tanh %96 : vector<2x32xf32>
    %98 = arith.mulf %91, %97 : vector<2x32xf32>
    %99 = vector.extract_strided_slice %0 {offsets = [0, 5, 0], sizes = [2, 1, 128], strides = [1, 1, 1]} : vector<2x8x128xf32> to vector<2x1x128xf32>
    %100 = vector.shape_cast %99 : vector<2x1x128xf32> to vector<2x128xf32>
    %cst_15 = arith.constant dense<0.000000e+00> : vector<2x128xf32>
    %101 = tpu.matmul %98, %1, %cst_15 {dimension_numbers = #tpu.dot_dimension_numbers<[1], [0], [0], [1], [0, 0, 1, 1], [], []>} : vector<2x32xf32>, vector<32x128xf32>, vector<2x128xf32> -> vector<2x128xf32>
    %102 = arith.addf %100, %101 : vector<2x128xf32>
    %103 = arith.negf %102 : vector<2x128xf32>
    %104 = math.exp %103 : vector<2x128xf32>
    %cst_16 = arith.constant 1.000000e+00 : f32
    %105 = vector.broadcast %cst_16 : f32 to vector<2x128xf32>
    %106 = arith.addf %105, %104 : vector<2x128xf32>
    %107 = arith.divf %105, %106 : vector<2x128xf32>
    %108 = vector.extract_strided_slice %107 {offsets = [0, 0], sizes = [2, 32], strides = [1, 1]} : vector<2x128xf32> to vector<2x32xf32>
    %109 = vector.extract_strided_slice %107 {offsets = [0, 32], sizes = [2, 32], strides = [1, 1]} : vector<2x128xf32> to vector<2x32xf32>
    %110 = vector.extract_strided_slice %107 {offsets = [0, 96], sizes = [2, 32], strides = [1, 1]} : vector<2x128xf32> to vector<2x32xf32>
    %111 = vector.extract_strided_slice %102 {offsets = [0, 64], sizes = [2, 32], strides = [1, 1]} : vector<2x128xf32> to vector<2x32xf32>
    %112 = math.tanh %111 : vector<2x32xf32>
    %113 = arith.mulf %109, %96 : vector<2x32xf32>
    %114 = arith.mulf %108, %112 : vector<2x32xf32>
    %115 = arith.addf %113, %114 : vector<2x32xf32>
    %116 = math.tanh %115 : vector<2x32xf32>
    %117 = arith.mulf %110, %116 : vector<2x32xf32>
    %118 = vector.extract_strided_slice %0 {offsets = [0, 6, 0], sizes = [2, 1, 128], strides = [1, 1, 1]} : vector<2x8x128xf32> to vector<2x1x128xf32>
    %119 = vector.shape_cast %118 : vector<2x1x128xf32> to vector<2x128xf32>
    %cst_17 = arith.constant dense<0.000000e+00> : vector<2x128xf32>
    %120 = tpu.matmul %117, %1, %cst_17 {dimension_numbers = #tpu.dot_dimension_numbers<[1], [0], [0], [1], [0, 0, 1, 1], [], []>} : vector<2x32xf32>, vector<32x128xf32>, vector<2x128xf32> -> vector<2x128xf32>
    %121 = arith.addf %119, %120 : vector<2x128xf32>
    %122 = arith.negf %121 : vector<2x128xf32>
    %123 = math.exp %122 : vector<2x128xf32>
    %cst_18 = arith.constant 1.000000e+00 : f32
    %124 = vector.broadcast %cst_18 : f32 to vector<2x128xf32>
    %125 = arith.addf %124, %123 : vector<2x128xf32>
    %126 = arith.divf %124, %125 : vector<2x128xf32>
    %127 = vector.extract_strided_slice %126 {offsets = [0, 0], sizes = [2, 32], strides = [1, 1]} : vector<2x128xf32> to vector<2x32xf32>
    %128 = vector.extract_strided_slice %126 {offsets = [0, 32], sizes = [2, 32], strides = [1, 1]} : vector<2x128xf32> to vector<2x32xf32>
    %129 = vector.extract_strided_slice %126 {offsets = [0, 96], sizes = [2, 32], strides = [1, 1]} : vector<2x128xf32> to vector<2x32xf32>
    %130 = vector.extract_strided_slice %121 {offsets = [0, 64], sizes = [2, 32], strides = [1, 1]} : vector<2x128xf32> to vector<2x32xf32>
    %131 = math.tanh %130 : vector<2x32xf32>
    %132 = arith.mulf %128, %115 : vector<2x32xf32>
    %133 = arith.mulf %127, %131 : vector<2x32xf32>
    %134 = arith.addf %132, %133 : vector<2x32xf32>
    %135 = math.tanh %134 : vector<2x32xf32>
    %136 = arith.mulf %129, %135 : vector<2x32xf32>
    %137 = vector.extract_strided_slice %0 {offsets = [0, 7, 0], sizes = [2, 1, 128], strides = [1, 1, 1]} : vector<2x8x128xf32> to vector<2x1x128xf32>
    %138 = vector.shape_cast %137 : vector<2x1x128xf32> to vector<2x128xf32>
    %cst_19 = arith.constant dense<0.000000e+00> : vector<2x128xf32>
    %139 = tpu.matmul %136, %1, %cst_19 {dimension_numbers = #tpu.dot_dimension_numbers<[1], [0], [0], [1], [0, 0, 1, 1], [], []>} : vector<2x32xf32>, vector<32x128xf32>, vector<2x128xf32> -> vector<2x128xf32>
    %140 = arith.addf %138, %139 : vector<2x128xf32>
    %141 = arith.negf %140 : vector<2x128xf32>
    %142 = math.exp %141 : vector<2x128xf32>
    %cst_20 = arith.constant 1.000000e+00 : f32
    %143 = vector.broadcast %cst_20 : f32 to vector<2x128xf32>
    %144 = arith.addf %143, %142 : vector<2x128xf32>
    %145 = arith.divf %143, %144 : vector<2x128xf32>
    %146 = vector.extract_strided_slice %145 {offsets = [0, 0], sizes = [2, 32], strides = [1, 1]} : vector<2x128xf32> to vector<2x32xf32>
    %147 = vector.extract_strided_slice %145 {offsets = [0, 32], sizes = [2, 32], strides = [1, 1]} : vector<2x128xf32> to vector<2x32xf32>
    %148 = vector.extract_strided_slice %145 {offsets = [0, 96], sizes = [2, 32], strides = [1, 1]} : vector<2x128xf32> to vector<2x32xf32>
    %149 = vector.extract_strided_slice %140 {offsets = [0, 64], sizes = [2, 32], strides = [1, 1]} : vector<2x128xf32> to vector<2x32xf32>
    %150 = math.tanh %149 : vector<2x32xf32>
    %151 = arith.mulf %147, %134 : vector<2x32xf32>
    %152 = arith.mulf %146, %150 : vector<2x32xf32>
    %153 = arith.addf %151, %152 : vector<2x32xf32>
    %154 = math.tanh %153 : vector<2x32xf32>
    %155 = arith.mulf %148, %154 : vector<2x32xf32>
    %156 = vector.shape_cast %22 : vector<2x32xf32> to vector<2x1x32xf32>
    %157 = vector.shape_cast %41 : vector<2x32xf32> to vector<2x1x32xf32>
    %158 = vector.shape_cast %60 : vector<2x32xf32> to vector<2x1x32xf32>
    %159 = vector.shape_cast %79 : vector<2x32xf32> to vector<2x1x32xf32>
    %160 = vector.shape_cast %98 : vector<2x32xf32> to vector<2x1x32xf32>
    %161 = vector.shape_cast %117 : vector<2x32xf32> to vector<2x1x32xf32>
    %162 = vector.shape_cast %136 : vector<2x32xf32> to vector<2x1x32xf32>
    %163 = vector.shape_cast %155 : vector<2x32xf32> to vector<2x1x32xf32>
    %164 = tpu.concatenate %156, %157, %158, %159, %160, %161, %162, %163 in 1 : vector<2x1x32xf32>, vector<2x1x32xf32>, vector<2x1x32xf32>, vector<2x1x32xf32>, vector<2x1x32xf32>, vector<2x1x32xf32>, vector<2x1x32xf32>, vector<2x1x32xf32> -> vector<2x8x32xf32>
    %165 = vector.shape_cast %164 : vector<2x8x32xf32> to vector<16x32xf32>
    %c0_21 = arith.constant 0 : index
    %c0_22 = arith.constant 0 : index
    %166 = vector.load %arg4[%c0_21, %c0_22] : memref<32x128xf32, #tpu.memory_space<vmem>>, vector<32x128xf32>
    %cst_23 = arith.constant dense<0.000000e+00> : vector<16x128xf32>
    %167 = tpu.matmul %165, %166, %cst_23 {dimension_numbers = #tpu.dot_dimension_numbers<[1], [0], [0], [1], [0, 0, 1, 1], [], []>} : vector<16x32xf32>, vector<32x128xf32>, vector<16x128xf32> -> vector<16x128xf32>
    %c0_24 = arith.constant 0 : index
    %c0_25 = arith.constant 0 : index
    %168 = vector.load %arg5[%c0_24, %c0_25] : memref<1x128xf32, #tpu.memory_space<vmem>>, vector<1x128xf32>
    %169 = vector.broadcast %168 : vector<1x128xf32> to vector<16x128xf32>
    %170 = arith.addf %167, %169 : vector<16x128xf32>
    %171 = vector.shape_cast %170 : vector<16x128xf32> to vector<2x8x128xf32>
    %c0_26 = arith.constant 0 : index
    %c0_27 = arith.constant 0 : index
    %172 = vector.load %arg3[%c0_26, %c0_27] : memref<32x128xf32, #tpu.memory_space<vmem>>, vector<32x128xf32>
    %cst_28 = arith.constant 0.000000e+00 : f32
    %173 = vector.broadcast %cst_28 : f32 to vector<2x32xf32>
    %cst_29 = arith.constant 0.000000e+00 : f32
    %174 = vector.broadcast %cst_29 : f32 to vector<2x32xf32>
    %175 = vector.extract_strided_slice %171 {offsets = [0, 0, 0], sizes = [2, 1, 128], strides = [1, 1, 1]} : vector<2x8x128xf32> to vector<2x1x128xf32>
    %176 = vector.shape_cast %175 : vector<2x1x128xf32> to vector<2x128xf32>
    %cst_30 = arith.constant dense<0.000000e+00> : vector<2x128xf32>
    %177 = tpu.matmul %173, %172, %cst_30 {dimension_numbers = #tpu.dot_dimension_numbers<[1], [0], [0], [1], [0, 0, 1, 1], [], []>} : vector<2x32xf32>, vector<32x128xf32>, vector<2x128xf32> -> vector<2x128xf32>
    %178 = arith.addf %176, %177 : vector<2x128xf32>
    %179 = arith.negf %178 : vector<2x128xf32>
    %180 = math.exp %179 : vector<2x128xf32>
    %cst_31 = arith.constant 1.000000e+00 : f32
    %181 = vector.broadcast %cst_31 : f32 to vector<2x128xf32>
    %182 = arith.addf %181, %180 : vector<2x128xf32>
    %183 = arith.divf %181, %182 : vector<2x128xf32>
    %184 = vector.extract_strided_slice %183 {offsets = [0, 0], sizes = [2, 32], strides = [1, 1]} : vector<2x128xf32> to vector<2x32xf32>
    %185 = vector.extract_strided_slice %183 {offsets = [0, 32], sizes = [2, 32], strides = [1, 1]} : vector<2x128xf32> to vector<2x32xf32>
    %186 = vector.extract_strided_slice %183 {offsets = [0, 96], sizes = [2, 32], strides = [1, 1]} : vector<2x128xf32> to vector<2x32xf32>
    %187 = vector.extract_strided_slice %178 {offsets = [0, 64], sizes = [2, 32], strides = [1, 1]} : vector<2x128xf32> to vector<2x32xf32>
    %188 = math.tanh %187 : vector<2x32xf32>
    %189 = arith.mulf %185, %174 : vector<2x32xf32>
    %190 = arith.mulf %184, %188 : vector<2x32xf32>
    %191 = arith.addf %189, %190 : vector<2x32xf32>
    %192 = math.tanh %191 : vector<2x32xf32>
    %193 = arith.mulf %186, %192 : vector<2x32xf32>
    %194 = vector.extract_strided_slice %171 {offsets = [0, 1, 0], sizes = [2, 1, 128], strides = [1, 1, 1]} : vector<2x8x128xf32> to vector<2x1x128xf32>
    %195 = vector.shape_cast %194 : vector<2x1x128xf32> to vector<2x128xf32>
    %cst_32 = arith.constant dense<0.000000e+00> : vector<2x128xf32>
    %196 = tpu.matmul %193, %172, %cst_32 {dimension_numbers = #tpu.dot_dimension_numbers<[1], [0], [0], [1], [0, 0, 1, 1], [], []>} : vector<2x32xf32>, vector<32x128xf32>, vector<2x128xf32> -> vector<2x128xf32>
    %197 = arith.addf %195, %196 : vector<2x128xf32>
    %198 = arith.negf %197 : vector<2x128xf32>
    %199 = math.exp %198 : vector<2x128xf32>
    %cst_33 = arith.constant 1.000000e+00 : f32
    %200 = vector.broadcast %cst_33 : f32 to vector<2x128xf32>
    %201 = arith.addf %200, %199 : vector<2x128xf32>
    %202 = arith.divf %200, %201 : vector<2x128xf32>
    %203 = vector.extract_strided_slice %202 {offsets = [0, 0], sizes = [2, 32], strides = [1, 1]} : vector<2x128xf32> to vector<2x32xf32>
    %204 = vector.extract_strided_slice %202 {offsets = [0, 32], sizes = [2, 32], strides = [1, 1]} : vector<2x128xf32> to vector<2x32xf32>
    %205 = vector.extract_strided_slice %202 {offsets = [0, 96], sizes = [2, 32], strides = [1, 1]} : vector<2x128xf32> to vector<2x32xf32>
    %206 = vector.extract_strided_slice %197 {offsets = [0, 64], sizes = [2, 32], strides = [1, 1]} : vector<2x128xf32> to vector<2x32xf32>
    %207 = math.tanh %206 : vector<2x32xf32>
    %208 = arith.mulf %204, %191 : vector<2x32xf32>
    %209 = arith.mulf %203, %207 : vector<2x32xf32>
    %210 = arith.addf %208, %209 : vector<2x32xf32>
    %211 = math.tanh %210 : vector<2x32xf32>
    %212 = arith.mulf %205, %211 : vector<2x32xf32>
    %213 = vector.extract_strided_slice %171 {offsets = [0, 2, 0], sizes = [2, 1, 128], strides = [1, 1, 1]} : vector<2x8x128xf32> to vector<2x1x128xf32>
    %214 = vector.shape_cast %213 : vector<2x1x128xf32> to vector<2x128xf32>
    %cst_34 = arith.constant dense<0.000000e+00> : vector<2x128xf32>
    %215 = tpu.matmul %212, %172, %cst_34 {dimension_numbers = #tpu.dot_dimension_numbers<[1], [0], [0], [1], [0, 0, 1, 1], [], []>} : vector<2x32xf32>, vector<32x128xf32>, vector<2x128xf32> -> vector<2x128xf32>
    %216 = arith.addf %214, %215 : vector<2x128xf32>
    %217 = arith.negf %216 : vector<2x128xf32>
    %218 = math.exp %217 : vector<2x128xf32>
    %cst_35 = arith.constant 1.000000e+00 : f32
    %219 = vector.broadcast %cst_35 : f32 to vector<2x128xf32>
    %220 = arith.addf %219, %218 : vector<2x128xf32>
    %221 = arith.divf %219, %220 : vector<2x128xf32>
    %222 = vector.extract_strided_slice %221 {offsets = [0, 0], sizes = [2, 32], strides = [1, 1]} : vector<2x128xf32> to vector<2x32xf32>
    %223 = vector.extract_strided_slice %221 {offsets = [0, 32], sizes = [2, 32], strides = [1, 1]} : vector<2x128xf32> to vector<2x32xf32>
    %224 = vector.extract_strided_slice %221 {offsets = [0, 96], sizes = [2, 32], strides = [1, 1]} : vector<2x128xf32> to vector<2x32xf32>
    %225 = vector.extract_strided_slice %216 {offsets = [0, 64], sizes = [2, 32], strides = [1, 1]} : vector<2x128xf32> to vector<2x32xf32>
    %226 = math.tanh %225 : vector<2x32xf32>
    %227 = arith.mulf %223, %210 : vector<2x32xf32>
    %228 = arith.mulf %222, %226 : vector<2x32xf32>
    %229 = arith.addf %227, %228 : vector<2x32xf32>
    %230 = math.tanh %229 : vector<2x32xf32>
    %231 = arith.mulf %224, %230 : vector<2x32xf32>
    %232 = vector.extract_strided_slice %171 {offsets = [0, 3, 0], sizes = [2, 1, 128], strides = [1, 1, 1]} : vector<2x8x128xf32> to vector<2x1x128xf32>
    %233 = vector.shape_cast %232 : vector<2x1x128xf32> to vector<2x128xf32>
    %cst_36 = arith.constant dense<0.000000e+00> : vector<2x128xf32>
    %234 = tpu.matmul %231, %172, %cst_36 {dimension_numbers = #tpu.dot_dimension_numbers<[1], [0], [0], [1], [0, 0, 1, 1], [], []>} : vector<2x32xf32>, vector<32x128xf32>, vector<2x128xf32> -> vector<2x128xf32>
    %235 = arith.addf %233, %234 : vector<2x128xf32>
    %236 = arith.negf %235 : vector<2x128xf32>
    %237 = math.exp %236 : vector<2x128xf32>
    %cst_37 = arith.constant 1.000000e+00 : f32
    %238 = vector.broadcast %cst_37 : f32 to vector<2x128xf32>
    %239 = arith.addf %238, %237 : vector<2x128xf32>
    %240 = arith.divf %238, %239 : vector<2x128xf32>
    %241 = vector.extract_strided_slice %240 {offsets = [0, 0], sizes = [2, 32], strides = [1, 1]} : vector<2x128xf32> to vector<2x32xf32>
    %242 = vector.extract_strided_slice %240 {offsets = [0, 32], sizes = [2, 32], strides = [1, 1]} : vector<2x128xf32> to vector<2x32xf32>
    %243 = vector.extract_strided_slice %240 {offsets = [0, 96], sizes = [2, 32], strides = [1, 1]} : vector<2x128xf32> to vector<2x32xf32>
    %244 = vector.extract_strided_slice %235 {offsets = [0, 64], sizes = [2, 32], strides = [1, 1]} : vector<2x128xf32> to vector<2x32xf32>
    %245 = math.tanh %244 : vector<2x32xf32>
    %246 = arith.mulf %242, %229 : vector<2x32xf32>
    %247 = arith.mulf %241, %245 : vector<2x32xf32>
    %248 = arith.addf %246, %247 : vector<2x32xf32>
    %249 = math.tanh %248 : vector<2x32xf32>
    %250 = arith.mulf %243, %249 : vector<2x32xf32>
    %251 = vector.extract_strided_slice %171 {offsets = [0, 4, 0], sizes = [2, 1, 128], strides = [1, 1, 1]} : vector<2x8x128xf32> to vector<2x1x128xf32>
    %252 = vector.shape_cast %251 : vector<2x1x128xf32> to vector<2x128xf32>
    %cst_38 = arith.constant dense<0.000000e+00> : vector<2x128xf32>
    %253 = tpu.matmul %250, %172, %cst_38 {dimension_numbers = #tpu.dot_dimension_numbers<[1], [0], [0], [1], [0, 0, 1, 1], [], []>} : vector<2x32xf32>, vector<32x128xf32>, vector<2x128xf32> -> vector<2x128xf32>
    %254 = arith.addf %252, %253 : vector<2x128xf32>
    %255 = arith.negf %254 : vector<2x128xf32>
    %256 = math.exp %255 : vector<2x128xf32>
    %cst_39 = arith.constant 1.000000e+00 : f32
    %257 = vector.broadcast %cst_39 : f32 to vector<2x128xf32>
    %258 = arith.addf %257, %256 : vector<2x128xf32>
    %259 = arith.divf %257, %258 : vector<2x128xf32>
    %260 = vector.extract_strided_slice %259 {offsets = [0, 0], sizes = [2, 32], strides = [1, 1]} : vector<2x128xf32> to vector<2x32xf32>
    %261 = vector.extract_strided_slice %259 {offsets = [0, 32], sizes = [2, 32], strides = [1, 1]} : vector<2x128xf32> to vector<2x32xf32>
    %262 = vector.extract_strided_slice %259 {offsets = [0, 96], sizes = [2, 32], strides = [1, 1]} : vector<2x128xf32> to vector<2x32xf32>
    %263 = vector.extract_strided_slice %254 {offsets = [0, 64], sizes = [2, 32], strides = [1, 1]} : vector<2x128xf32> to vector<2x32xf32>
    %264 = math.tanh %263 : vector<2x32xf32>
    %265 = arith.mulf %261, %248 : vector<2x32xf32>
    %266 = arith.mulf %260, %264 : vector<2x32xf32>
    %267 = arith.addf %265, %266 : vector<2x32xf32>
    %268 = math.tanh %267 : vector<2x32xf32>
    %269 = arith.mulf %262, %268 : vector<2x32xf32>
    %270 = vector.extract_strided_slice %171 {offsets = [0, 5, 0], sizes = [2, 1, 128], strides = [1, 1, 1]} : vector<2x8x128xf32> to vector<2x1x128xf32>
    %271 = vector.shape_cast %270 : vector<2x1x128xf32> to vector<2x128xf32>
    %cst_40 = arith.constant dense<0.000000e+00> : vector<2x128xf32>
    %272 = tpu.matmul %269, %172, %cst_40 {dimension_numbers = #tpu.dot_dimension_numbers<[1], [0], [0], [1], [0, 0, 1, 1], [], []>} : vector<2x32xf32>, vector<32x128xf32>, vector<2x128xf32> -> vector<2x128xf32>
    %273 = arith.addf %271, %272 : vector<2x128xf32>
    %274 = arith.negf %273 : vector<2x128xf32>
    %275 = math.exp %274 : vector<2x128xf32>
    %cst_41 = arith.constant 1.000000e+00 : f32
    %276 = vector.broadcast %cst_41 : f32 to vector<2x128xf32>
    %277 = arith.addf %276, %275 : vector<2x128xf32>
    %278 = arith.divf %276, %277 : vector<2x128xf32>
    %279 = vector.extract_strided_slice %278 {offsets = [0, 0], sizes = [2, 32], strides = [1, 1]} : vector<2x128xf32> to vector<2x32xf32>
    %280 = vector.extract_strided_slice %278 {offsets = [0, 32], sizes = [2, 32], strides = [1, 1]} : vector<2x128xf32> to vector<2x32xf32>
    %281 = vector.extract_strided_slice %278 {offsets = [0, 96], sizes = [2, 32], strides = [1, 1]} : vector<2x128xf32> to vector<2x32xf32>
    %282 = vector.extract_strided_slice %273 {offsets = [0, 64], sizes = [2, 32], strides = [1, 1]} : vector<2x128xf32> to vector<2x32xf32>
    %283 = math.tanh %282 : vector<2x32xf32>
    %284 = arith.mulf %280, %267 : vector<2x32xf32>
    %285 = arith.mulf %279, %283 : vector<2x32xf32>
    %286 = arith.addf %284, %285 : vector<2x32xf32>
    %287 = math.tanh %286 : vector<2x32xf32>
    %288 = arith.mulf %281, %287 : vector<2x32xf32>
    %289 = vector.extract_strided_slice %171 {offsets = [0, 6, 0], sizes = [2, 1, 128], strides = [1, 1, 1]} : vector<2x8x128xf32> to vector<2x1x128xf32>
    %290 = vector.shape_cast %289 : vector<2x1x128xf32> to vector<2x128xf32>
    %cst_42 = arith.constant dense<0.000000e+00> : vector<2x128xf32>
    %291 = tpu.matmul %288, %172, %cst_42 {dimension_numbers = #tpu.dot_dimension_numbers<[1], [0], [0], [1], [0, 0, 1, 1], [], []>} : vector<2x32xf32>, vector<32x128xf32>, vector<2x128xf32> -> vector<2x128xf32>
    %292 = arith.addf %290, %291 : vector<2x128xf32>
    %293 = arith.negf %292 : vector<2x128xf32>
    %294 = math.exp %293 : vector<2x128xf32>
    %cst_43 = arith.constant 1.000000e+00 : f32
    %295 = vector.broadcast %cst_43 : f32 to vector<2x128xf32>
    %296 = arith.addf %295, %294 : vector<2x128xf32>
    %297 = arith.divf %295, %296 : vector<2x128xf32>
    %298 = vector.extract_strided_slice %297 {offsets = [0, 0], sizes = [2, 32], strides = [1, 1]} : vector<2x128xf32> to vector<2x32xf32>
    %299 = vector.extract_strided_slice %297 {offsets = [0, 32], sizes = [2, 32], strides = [1, 1]} : vector<2x128xf32> to vector<2x32xf32>
    %300 = vector.extract_strided_slice %297 {offsets = [0, 96], sizes = [2, 32], strides = [1, 1]} : vector<2x128xf32> to vector<2x32xf32>
    %301 = vector.extract_strided_slice %292 {offsets = [0, 64], sizes = [2, 32], strides = [1, 1]} : vector<2x128xf32> to vector<2x32xf32>
    %302 = math.tanh %301 : vector<2x32xf32>
    %303 = arith.mulf %299, %286 : vector<2x32xf32>
    %304 = arith.mulf %298, %302 : vector<2x32xf32>
    %305 = arith.addf %303, %304 : vector<2x32xf32>
    %306 = math.tanh %305 : vector<2x32xf32>
    %307 = arith.mulf %300, %306 : vector<2x32xf32>
    %308 = vector.extract_strided_slice %171 {offsets = [0, 7, 0], sizes = [2, 1, 128], strides = [1, 1, 1]} : vector<2x8x128xf32> to vector<2x1x128xf32>
    %309 = vector.shape_cast %308 : vector<2x1x128xf32> to vector<2x128xf32>
    %cst_44 = arith.constant dense<0.000000e+00> : vector<2x128xf32>
    %310 = tpu.matmul %307, %172, %cst_44 {dimension_numbers = #tpu.dot_dimension_numbers<[1], [0], [0], [1], [0, 0, 1, 1], [], []>} : vector<2x32xf32>, vector<32x128xf32>, vector<2x128xf32> -> vector<2x128xf32>
    %311 = arith.addf %309, %310 : vector<2x128xf32>
    %312 = arith.negf %311 : vector<2x128xf32>
    %313 = math.exp %312 : vector<2x128xf32>
    %cst_45 = arith.constant 1.000000e+00 : f32
    %314 = vector.broadcast %cst_45 : f32 to vector<2x128xf32>
    %315 = arith.addf %314, %313 : vector<2x128xf32>
    %316 = arith.divf %314, %315 : vector<2x128xf32>
    %317 = vector.extract_strided_slice %316 {offsets = [0, 0], sizes = [2, 32], strides = [1, 1]} : vector<2x128xf32> to vector<2x32xf32>
    %318 = vector.extract_strided_slice %316 {offsets = [0, 32], sizes = [2, 32], strides = [1, 1]} : vector<2x128xf32> to vector<2x32xf32>
    %319 = vector.extract_strided_slice %316 {offsets = [0, 96], sizes = [2, 32], strides = [1, 1]} : vector<2x128xf32> to vector<2x32xf32>
    %320 = vector.extract_strided_slice %311 {offsets = [0, 64], sizes = [2, 32], strides = [1, 1]} : vector<2x128xf32> to vector<2x32xf32>
    %321 = math.tanh %320 : vector<2x32xf32>
    %322 = arith.mulf %318, %305 : vector<2x32xf32>
    %323 = arith.mulf %317, %321 : vector<2x32xf32>
    %324 = arith.addf %322, %323 : vector<2x32xf32>
    %325 = math.tanh %324 : vector<2x32xf32>
    %326 = arith.mulf %319, %325 : vector<2x32xf32>
    %327 = vector.shape_cast %193 : vector<2x32xf32> to vector<2x1x32xf32>
    %328 = vector.shape_cast %212 : vector<2x32xf32> to vector<2x1x32xf32>
    %329 = vector.shape_cast %231 : vector<2x32xf32> to vector<2x1x32xf32>
    %330 = vector.shape_cast %250 : vector<2x32xf32> to vector<2x1x32xf32>
    %331 = vector.shape_cast %269 : vector<2x32xf32> to vector<2x1x32xf32>
    %332 = vector.shape_cast %288 : vector<2x32xf32> to vector<2x1x32xf32>
    %333 = vector.shape_cast %307 : vector<2x32xf32> to vector<2x1x32xf32>
    %334 = vector.shape_cast %326 : vector<2x32xf32> to vector<2x1x32xf32>
    %335 = tpu.concatenate %327, %328, %329, %330, %331, %332, %333, %334 in 1 : vector<2x1x32xf32>, vector<2x1x32xf32>, vector<2x1x32xf32>, vector<2x1x32xf32>, vector<2x1x32xf32>, vector<2x1x32xf32>, vector<2x1x32xf32>, vector<2x1x32xf32> -> vector<2x8x32xf32>
    %336 = vector.shape_cast %335 : vector<2x8x32xf32> to vector<16x32xf32>
    %c0_46 = arith.constant 0 : index
    %c0_47 = arith.constant 0 : index
    %337 = vector.load %arg6[%c0_46, %c0_47] : memref<32x128xf32, #tpu.memory_space<vmem>>, vector<32x128xf32>
    %cst_48 = arith.constant dense<0.000000e+00> : vector<16x128xf32>
    %338 = tpu.matmul %336, %337, %cst_48 {dimension_numbers = #tpu.dot_dimension_numbers<[1], [0], [0], [1], [0, 0, 1, 1], [], []>} : vector<16x32xf32>, vector<32x128xf32>, vector<16x128xf32> -> vector<16x128xf32>
    %c0_49 = arith.constant 0 : index
    %c0_50 = arith.constant 0 : index
    %339 = vector.load %arg7[%c0_49, %c0_50] : memref<1x128xf32, #tpu.memory_space<vmem>>, vector<1x128xf32>
    %340 = vector.broadcast %339 : vector<1x128xf32> to vector<16x128xf32>
    %341 = arith.addf %338, %340 : vector<16x128xf32>
    %342 = vector.shape_cast %341 : vector<16x128xf32> to vector<2x8x128xf32>
    %c0_51 = arith.constant 0 : index
    %c0_52 = arith.constant 0 : index
    %c0_53 = arith.constant 0 : index
    %343 = vector.load %arg8[%c0_51, %c0_52, %c0_53] : memref<2x8x128xf32, #tpu.memory_space<vmem>>, vector<2x8x128xf32>
    tpu.vector_store %arg8[%c0_51, %c0_52, %c0_53], %342 {strides = array<i32>} : memref<2x8x128xf32, #tpu.memory_space<vmem>>, vector<2x8x128xf32>,
    return
  }
  func.func @transform_0(%arg0: i32) -> (i32, i32, i32) {
    %c0_i32 = arith.constant 0 : i32
    %c0_i32_0 = arith.constant 0 : i32
    %c0_i32_1 = arith.constant 0 : i32
    return %arg0, %c0_i32, %c0_i32_0 : i32, i32, i32
  }
  func.func @transform_1(%arg0: i32) -> (i32, i32) {
    %c0_i32 = arith.constant 0 : i32
    %c0_i32_0 = arith.constant 0 : i32
    %c0_i32_1 = arith.constant 0 : i32
    return %c0_i32, %c0_i32_0 : i32, i32
  }
  func.func @transform_2(%arg0: i32) -> (i32, i32) {
    %c0_i32 = arith.constant 0 : i32
    %c0_i32_0 = arith.constant 0 : i32
    %c0_i32_1 = arith.constant 0 : i32
    return %c0_i32, %c0_i32_0 : i32, i32
  }
  func.func @transform_3(%arg0: i32) -> (i32, i32) {
    %c0_i32 = arith.constant 0 : i32
    %c0_i32_0 = arith.constant 0 : i32
    %c0_i32_1 = arith.constant 0 : i32
    return %c0_i32, %c0_i32_0 : i32, i32
  }
  func.func @transform_4(%arg0: i32) -> (i32, i32) {
    %c0_i32 = arith.constant 0 : i32
    %c0_i32_0 = arith.constant 0 : i32
    %c0_i32_1 = arith.constant 0 : i32
    return %c0_i32, %c0_i32_0 : i32, i32
  }
  func.func @transform_5(%arg0: i32) -> (i32, i32) {
    %c0_i32 = arith.constant 0 : i32
    %c0_i32_0 = arith.constant 0 : i32
    %c0_i32_1 = arith.constant 0 : i32
    return %c0_i32, %c0_i32_0 : i32, i32
  }
  func.func @transform_6(%arg0: i32) -> (i32, i32) {
    %c0_i32 = arith.constant 0 : i32
    %c0_i32_0 = arith.constant 0 : i32
    %c0_i32_1 = arith.constant 0 : i32
    return %c0_i32, %c0_i32_0 : i32, i32
  }
  func.func @transform_7(%arg0: i32) -> (i32, i32, i32) {
    %c0_i32 = arith.constant 0 : i32
    %c0_i32_0 = arith.constant 0 : i32
    %c0_i32_1 = arith.constant 0 : i32
    return %arg0, %c0_i32, %c0_i32_0 : i32, i32, i32
  }
}

</mosaic_0001>

<llo_original>
// kernel: model_forward.1
$region0: #{model_forward.1}
  #allocation0 [shape = 'u32[]', space=smem, size = 0x4, offset = 0x4, fixed_abs, tag = 'smem constant byte address 0x4 - core index']
  #allocation1 [shape = 'u32[72,128]{1,0:T(1,128)}', space=vmem, size = 0x9000, scoped, tag = 'internal scratch']
  %s0 = inlined_call_operand.vmem [shape: f32[2,8,128], index: 0, kind: input, shape index: {}]
  %s1 = inlined_call_operand.vmem [shape: f32[32,128], index: 1, kind: input, shape index: {}]
  %s2 = inlined_call_operand.vmem [shape: f32[32,128], index: 2, kind: input, shape index: {}]
  %s3 = inlined_call_operand.vmem [shape: f32[32,128], index: 3, kind: input, shape index: {}]
  %s4 = inlined_call_operand.vmem [shape: f32[1,128], index: 4, kind: input, shape index: {}]
  %s5 = inlined_call_operand.vmem [shape: f32[32,128], index: 5, kind: input, shape index: {}]
  %s6 = inlined_call_operand.vmem [shape: f32[1,128], index: 6, kind: input, shape index: {}]
  %s7 = inlined_call_operand.hbm [shape: f32[2,8,128], index: 7, kind: output, shape index: {}]
  %s8 = sld [smem:[#allocation0]]
  $region38: #{model_forward.1} parent=0
    _
  %s10 = ssub.s32 1, %s8
  %s11 = scalar_select 0, %s10, %s8
  $region1: #{model_forward.1} parent=0
    #allocation2 [shape = 'u8[8192]{0}', space=vmem, size = 0x2000, scoped, tag = 'output window, operand 0, single buffered']
    #allocation3 [shape = 's32[1]{0}', space=sflag, size = 0x4, scoped, tag = 'scoped memory for model_forward.1']
    %12 = vsyncpa [#allocation3], 0
    // Predicated region
    $region2: #{model_forward.1} parent=1 // pred_check
      _
    $region3: #{model_forward.1} parent=1 // pred_check_branch
      %14 = sbr.rel (0) target = $region5
    $region4: #{model_forward.1} parent=1 // pred_region
      _
    $region5: #{model_forward.1} parent=1 // pred_fallthru
      _
    // Predicated region
    $region6: #{model_forward.1} parent=1 // pred_check
      _
    $region7: #{model_forward.1} parent=1 // pred_check_branch
      %16 = sbr.rel (0) target = $region9
    $region8: #{model_forward.1} parent=1 // pred_region
      _
    $region9: #{model_forward.1} parent=1 // pred_fallthru
      _
    // Predicated region
    $region10: #{model_forward.1} parent=1 // pred_check
      _
    $region11: #{model_forward.1} parent=1 // pred_check_branch
      %18 = sbr.rel (0) target = $region13
    $region12: #{model_forward.1} parent=1 // pred_region
      _
    $region13: #{model_forward.1} parent=1 // pred_fallthru
      _
    // Predicated region
    $region14: #{model_forward.1} parent=1 // pred_check
      _
    $region15: #{model_forward.1} parent=1 // pred_check_branch
      %20 = sbr.rel (0) target = $region17
    $region16: #{model_forward.1} parent=1 // pred_region
      _
    $region17: #{model_forward.1} parent=1 // pred_fallthru
      _
    // Predicated region
    $region18: #{model_forward.1} parent=1 // pred_check
      _
    $region19: #{model_forward.1} parent=1 // pred_check_branch
      %22 = sbr.rel (0) target = $region21
    $region20: #{model_forward.1} parent=1 // pred_region
      _
    $region21: #{model_forward.1} parent=1 // pred_fallthru
      _
    // Predicated region
    $region22: #{model_forward.1} parent=1 // pred_check
      _
    $region23: #{model_forward.1} parent=1 // pred_check_branch
      %24 = sbr.rel (0) target = $region25
    $region24: #{model_forward.1} parent=1 // pred_region
      _
    $region25: #{model_forward.1} parent=1 // pred_fallthru
      _
    // Predicated region
    $region26: #{model_forward.1} parent=1 // pred_check
      _
    $region27: #{model_forward.1} parent=1 // pred_check_branch
      %26 = sbr.rel (0) target = $region29
    $region28: #{model_forward.1} parent=1 // pred_region
      _
    $region29: #{model_forward.1} parent=1 // pred_fallthru
      _
    %v27 = vld [vmem:[%s0] sm:$0xff]
    %v28 = vld [vmem:[%s0 + $0x8] sm:$0xff]
    %v29 = vld [vmem:[%s1] sm:$0xff]
    %v30 = vld [vmem:[%s1 + $0x8] sm:$0xff]
    %v31 = vld [vmem:[%s1 + $0x10] sm:$0xff]
    %v32 = vld [vmem:[%s1 + $0x18] sm:$0xff]
    %vm33 = vcmask 261120
    %v35 = vsel %vm33, 0.0, 0
    %37 = vmatpush.msra.mxu0 0.0
    %38 = vmatpush.msra.mxu0 0.0
    %39 = vmatpush.msra.mxu0 0.0
    %40 = vmatpush.msra.mxu0 0.0
    %41 = vmatpush.msra.mxu0 0.0
    %42 = vmatpush.msra.mxu0 0.0
    %43 = vmatpush.msra.mxu0 0.0
    %44 = vmatpush.msra.mxu0 0.0
    %45 = vmatpush.msra.mxu0 0.0
    %46 = vmatpush.msra.mxu0 0.0
    %47 = vmatpush.msra.mxu0 0.0
    %48 = vmatpush.msra.mxu0 0.0
    %49 = vmatpush.msra.mxu0 %v32
    %50 = vmatpush.msra.mxu0 %v31
    %51 = vmatpush.msra.mxu0 %v30
    %52 = vmatpush.msra.mxu0 %v29
    %53 = vmatmul.f32.gmra.mxu0 %v35
    %v54 = vpop.f32.mrf.mxu0
    %v55 = vadd.f32 0.0, %v54
    %56 = vdwg.mxu0
    %v58 = vrot.slane %v55, 1
    %v61 = vadd.f32 %v27, %v55
    %v62 = vadd.f32 %v28, %v58
    %v63 = vxor.u32 %v61, 2147483648
    %v64 = vxor.u32 %v62, 2147483648
    %v65 = vmul.f32 %v63, 1.442695
    %v66 = vpow.pop %v65
    %v67 = vmul.f32 %v64, 1.442695
    %v68 = vpow.pop %v67
    %v69 = vadd.f32 %v66, 1.0
    %v70 = vadd.f32 %v68, 1.0
    %v71 = vrcp.pop %v69
    %v72 = vmul.f32 %v69, %v71
    %v73 = vsub.f32 1.0, %v72
    %v74 = vmul.f32 %v71, %v73
    %v75 = vadd.f32 %v71, %v74
    %vm76 = vweird.f32 %v69
    %vm77 = vweird.f32 %v71
    %vm78 = vmor %vm76, %vm77
    %v79 = vsel %vm78, %v71, %v75
    %v80 = vand.u32 2147483647, %v69
    %vm81 = vcmp.eq.f32.partialorder %v80, 8.507059e+37
    %v82 = vand.u32 %v69, 2147483648
    %v83 = vor.u32 1.1754944e-38, %v82
    %v84 = vsel %vm81, %v83, %v79
    %v85 = vmul.f32 1.0, %v84
    %v86 = vrcp.pop %v70
    %v87 = vmul.f32 %v70, %v86
    %v88 = vsub.f32 1.0, %v87
    %v89 = vmul.f32 %v86, %v88
    %v90 = vadd.f32 %v86, %v89
    %vm91 = vweird.f32 %v70
    %vm92 = vweird.f32 %v86
    %vm93 = vmor %vm91, %vm92
    %v94 = vsel %vm93, %v86, %v90
    %v95 = vand.u32 2147483647, %v70
    %vm96 = vcmp.eq.f32.partialorder %v95, 8.507059e+37
    %v97 = vand.u32 %v70, 2147483648
    %v98 = vor.u32 1.1754944e-38, %v97
    %v99 = vsel %vm96, %v98, %v94
    %v100 = vmul.f32 1.0, %v99
    %v101 = vtanh.pop %v61
    %v102 = vtanh.pop %v62
    %v103 = vmul.f32 %v85, 0.0
    %v104 = vmul.f32 %v100, 0.0
    %107 = vrot.lane.b32.xlu0 %v101, 64
    %v108 = vpop.permute.xlu0 %107
    %109 = vrot.lane.b32.xlu0 %v102, 64
    %v110 = vpop.permute.xlu0 %109
    %v113 = vmul.f32 %v85, %v108
    %v114 = vmul.f32 %v100, %v110
    %117 = vrot.lane.b32.xlu0 %v113, 32
    %v118 = vpop.permute.xlu0 %117
    %119 = vrot.lane.b32.xlu0 %v114, 32
    %v120 = vpop.permute.xlu0 %119
    %v123 = vadd.f32 %v103, %v118
    %v124 = vadd.f32 %v104, %v120
    %v125 = vtanh.pop %v123
    %v126 = vtanh.pop %v124
    %129 = vrot.lane.b32.xlu0 %v125, 64
    %v130 = vpop.permute.xlu0 %129
    %131 = vrot.lane.b32.xlu0 %v126, 64
    %v132 = vpop.permute.xlu0 %131
    %v135 = vmul.f32 %v85, %v130
    %v136 = vmul.f32 %v100, %v132
    %v139 = vrot.slane %v136, 7
    %vm140 = vcmask 1041409
    %v141 = vsel %vm140, %v139, %v135
    %142 = vrot.lane.b32.xlu0 %v141, 32
    %v143 = vpop.permute.xlu0 %142
    %v144 = vsel %vm33, %v143, 0
    %146 = vmatpush.msra.mxu0 0.0
    %147 = vmatpush.msra.mxu0 0.0
    %148 = vmatpush.msra.mxu0 0.0
    %149 = vmatpush.msra.mxu0 0.0
    %150 = vmatpush.msra.mxu0 0.0
    %151 = vmatpush.msra.mxu0 0.0
    %152 = vmatpush.msra.mxu0 0.0
    %153 = vmatpush.msra.mxu0 0.0
    %154 = vmatpush.msra.mxu0 0.0
    %155 = vmatpush.msra.mxu0 0.0
    %156 = vmatpush.msra.mxu0 0.0
    %157 = vmatpush.msra.mxu0 0.0
    %158 = vmatpush.msra.mxu0 %v32
    %159 = vmatpush.msra.mxu0 %v31
    %160 = vmatpush.msra.mxu0 %v30
    %161 = vmatpush.msra.mxu0 %v29
    %162 = vmatmul.f32.gmra.mxu0 %v144
    %v163 = vpop.f32.mrf.mxu0
    %v164 = vadd.f32 0.0, %v163
    %165 = vdwg.mxu0
    %v167 = vrot.slane %v164, 7
    %v170 = vadd.f32 %v27, %v167
    %v171 = vadd.f32 %v28, %v164
    %v172 = vxor.u32 %v170, 2147483648
    %v173 = vxor.u32 %v171, 2147483648
    %v174 = vmul.f32 %v172, 1.442695
    %v175 = vpow.pop %v174
    %v176 = vmul.f32 %v173, 1.442695
    %v177 = vpow.pop %v176
    %v178 = vadd.f32 %v175, 1.0
    %v179 = vadd.f32 %v177, 1.0
    %v180 = vrcp.pop %v178
    %v181 = vmul.f32 %v178, %v180
    %v182 = vsub.f32 1.0, %v181
    %v183 = vmul.f32 %v180, %v182
    %v184 = vadd.f32 %v180, %v183
    %vm185 = vweird.f32 %v178
    %vm186 = vweird.f32 %v180
    %vm187 = vmor %vm185, %vm186
    %v188 = vsel %vm187, %v180, %v184
    %v189 = vand.u32 2147483647, %v178
    %vm190 = vcmp.eq.f32.partialorder %v189, 8.507059e+37
    %v191 = vand.u32 %v178, 2147483648
    %v192 = vor.u32 1.1754944e-38, %v191
    %v193 = vsel %vm190, %v192, %v188
    %v194 = vmul.f32 1.0, %v193
    %v195 = vrcp.pop %v179
    %v196 = vmul.f32 %v179, %v195
    %v197 = vsub.f32 1.0, %v196
    %v198 = vmul.f32 %v195, %v197
    %v199 = vadd.f32 %v195, %v198
    %vm200 = vweird.f32 %v179
    %vm201 = vweird.f32 %v195
    %vm202 = vmor %vm200, %vm201
    %v203 = vsel %vm202, %v195, %v199
    %v204 = vand.u32 2147483647, %v179
    %vm205 = vcmp.eq.f32.partialorder %v204, 8.507059e+37
    %v206 = vand.u32 %v179, 2147483648
    %v207 = vor.u32 1.1754944e-38, %v206
    %v208 = vsel %vm205, %v207, %v203
    %v209 = vmul.f32 1.0, %v208
    %v210 = vtanh.pop %v170
    %v211 = vtanh.pop %v171
    %v214 = vrot.slane %v123, 7
    %v215 = vrot.slane %v124, 7
    %v218 = vmul.f32 %v194, %v214
    %v219 = vmul.f32 %v209, %v215
    %222 = vrot.lane.b32.xlu0 %v210, 64
    %v223 = vpop.permute.xlu0 %222
    %224 = vrot.lane.b32.xlu0 %v211, 64
    %v225 = vpop.permute.xlu0 %224
    %v228 = vmul.f32 %v194, %v223
    %v229 = vmul.f32 %v209, %v225
    %232 = vrot.lane.b32.xlu0 %v228, 32
    %v233 = vpop.permute.xlu0 %232
    %234 = vrot.lane.b32.xlu0 %v229, 32
    %v235 = vpop.permute.xlu0 %234
    %v238 = vadd.f32 %v218, %v233
    %v239 = vadd.f32 %v219, %v235
    %v240 = vtanh.pop %v238
    %v241 = vtanh.pop %v239
    %244 = vrot.lane.b32.xlu0 %v240, 64
    %v245 = vpop.permute.xlu0 %244
    %246 = vrot.lane.b32.xlu0 %v241, 64
    %v247 = vpop.permute.xlu0 %246
    %v250 = vmul.f32 %v194, %v245
    %v251 = vmul.f32 %v209, %v247
    %v254 = vrot.slane %v250, 1
    %v255 = vsel %vm140, %v251, %v254
    %256 = vrot.lane.b32.xlu0 %v255, 32
    %v257 = vpop.permute.xlu0 %256
    %v258 = vsel %vm33, %v257, 0
    %260 = vmatpush.msra.mxu0 0.0
    %261 = vmatpush.msra.mxu0 0.0
    %262 = vmatpush.msra.mxu0 0.0
    %263 = vmatpush.msra.mxu0 0.0
    %264 = vmatpush.msra.mxu0 0.0
    %265 = vmatpush.msra.mxu0 0.0
    %266 = vmatpush.msra.mxu0 0.0
    %267 = vmatpush.msra.mxu0 0.0
    %268 = vmatpush.msra.mxu0 0.0
    %269 = vmatpush.msra.mxu0 0.0
    %270 = vmatpush.msra.mxu0 0.0
    %271 = vmatpush.msra.mxu0 0.0
    %272 = vmatpush.msra.mxu0 %v32
    %273 = vmatpush.msra.mxu0 %v31
    %274 = vmatpush.msra.mxu0 %v30
    %275 = vmatpush.msra.mxu0 %v29
    %276 = vmatmul.f32.gmra.mxu0 %v258
    %v277 = vpop.f32.mrf.mxu0
    %v278 = vadd.f32 0.0, %v277
    %279 = vdwg.mxu0
    %v281 = vrot.slane %v278, 6
    %v282 = vrot.slane %v278, 7
    %v285 = vadd.f32 %v27, %v281
    %v286 = vadd.f32 %v28, %v282
    %v287 = vxor.u32 %v285, 2147483648
    %v288 = vxor.u32 %v286, 2147483648
    %v289 = vmul.f32 %v287, 1.442695
    %v290 = vpow.pop %v289
    %v291 = vmul.f32 %v288, 1.442695
    %v292 = vpow.pop %v291
    %v293 = vadd.f32 %v290, 1.0
    %v294 = vadd.f32 %v292, 1.0
    %v295 = vrcp.pop %v293
    %v296 = vmul.f32 %v293, %v295
    %v297 = vsub.f32 1.0, %v296
    %v298 = vmul.f32 %v295, %v297
    %v299 = vadd.f32 %v295, %v298
    %vm300 = vweird.f32 %v293
    %vm301 = vweird.f32 %v295
    %vm302 = vmor %vm300, %vm301
    %v303 = vsel %vm302, %v295, %v299
    %v304 = vand.u32 2147483647, %v293
    %vm305 = vcmp.eq.f32.partialorder %v304, 8.507059e+37
    %v306 = vand.u32 %v293, 2147483648
    %v307 = vor.u32 1.1754944e-38, %v306
    %v308 = vsel %vm305, %v307, %v303
    %v309 = vmul.f32 1.0, %v308
    %v310 = vrcp.pop %v294
    %v311 = vmul.f32 %v294, %v310
    %v312 = vsub.f32 1.0, %v311
    %v313 = vmul.f32 %v310, %v312
    %v314 = vadd.f32 %v310, %v313
    %vm315 = vweird.f32 %v294
    %vm316 = vweird.f32 %v310
    %vm317 = vmor %vm315, %vm316
    %v318 = vsel %vm317, %v310, %v314
    %v319 = vand.u32 2147483647, %v294
    %vm320 = vcmp.eq.f32.partialorder %v319, 8.507059e+37
    %v321 = vand.u32 %v294, 2147483648
    %v322 = vor.u32 1.1754944e-38, %v321
    %v323 = vsel %vm320, %v322, %v318
    %v324 = vmul.f32 1.0, %v323
    %v325 = vtanh.pop %v285
    %v326 = vtanh.pop %v286
    %v329 = vrot.slane %v238, 7
    %v330 = vrot.slane %v239, 7
    %v333 = vmul.f32 %v309, %v329
    %v334 = vmul.f32 %v324, %v330
    %337 = vrot.lane.b32.xlu0 %v325, 64
    %v338 = vpop.permute.xlu0 %337
    %339 = vrot.lane.b32.xlu0 %v326, 64
    %v340 = vpop.permute.xlu0 %339
    %v343 = vmul.f32 %v309, %v338
    %v344 = vmul.f32 %v324, %v340
    %347 = vrot.lane.b32.xlu0 %v343, 32
    %v348 = vpop.permute.xlu0 %347
    %349 = vrot.lane.b32.xlu0 %v344, 32
    %v350 = vpop.permute.xlu0 %349
    %v353 = vadd.f32 %v333, %v348
    %v354 = vadd.f32 %v334, %v350
    %v355 = vtanh.pop %v353
    %v356 = vtanh.pop %v354
    %359 = vrot.lane.b32.xlu0 %v355, 64
    %v360 = vpop.permute.xlu0 %359
    %361 = vrot.lane.b32.xlu0 %v356, 64
    %v362 = vpop.permute.xlu0 %361
    %v365 = vmul.f32 %v309, %v360
    %v366 = vmul.f32 %v324, %v362
    %v369 = vrot.slane %v365, 2
    %v370 = vrot.slane %v366, 1
    %v371 = vsel %vm140, %v370, %v369
    %372 = vrot.lane.b32.xlu0 %v371, 32
    %v373 = vpop.permute.xlu0 %372
    %v374 = vsel %vm33, %v373, 0
    %376 = vmatpush.msra.mxu0 0.0
    %377 = vmatpush.msra.mxu0 0.0
    %378 = vmatpush.msra.mxu0 0.0
    %379 = vmatpush.msra.mxu0 0.0
    %380 = vmatpush.msra.mxu0 0.0
    %381 = vmatpush.msra.mxu0 0.0
    %382 = vmatpush.msra.mxu0 0.0
    %383 = vmatpush.msra.mxu0 0.0
    %384 = vmatpush.msra.mxu0 0.0
    %385 = vmatpush.msra.mxu0 0.0
    %386 = vmatpush.msra.mxu0 0.0
    %387 = vmatpush.msra.mxu0 0.0
    %388 = vmatpush.msra.mxu0 %v32
    %389 = vmatpush.msra.mxu0 %v31
    %390 = vmatpush.msra.mxu0 %v30
    %391 = vmatpush.msra.mxu0 %v29
    %392 = vmatmul.f32.gmra.mxu0 %v374
    %v393 = vpop.f32.mrf.mxu0
    %v394 = vadd.f32 0.0, %v393
    %395 = vdwg.mxu0
    %v397 = vrot.slane %v394, 5
    %v398 = vrot.slane %v394, 6
    %v401 = vadd.f32 %v27, %v397
    %v402 = vadd.f32 %v28, %v398
    %v403 = vxor.u32 %v401, 2147483648
    %v404 = vxor.u32 %v402, 2147483648
    %v405 = vmul.f32 %v403, 1.442695
    %v406 = vpow.pop %v405
    %v407 = vmul.f32 %v404, 1.442695
    %v408 = vpow.pop %v407
    %v409 = vadd.f32 %v406, 1.0
    %v410 = vadd.f32 %v408, 1.0
    %v411 = vrcp.pop %v409
    %v412 = vmul.f32 %v409, %v411
    %v413 = vsub.f32 1.0, %v412
    %v414 = vmul.f32 %v411, %v413
    %v415 = vadd.f32 %v411, %v414
    %vm416 = vweird.f32 %v409
    %vm417 = vweird.f32 %v411
    %vm418 = vmor %vm416, %vm417
    %v419 = vsel %vm418, %v411, %v415
    %v420 = vand.u32 2147483647, %v409
    %vm421 = vcmp.eq.f32.partialorder %v420, 8.507059e+37
    %v422 = vand.u32 %v409, 2147483648
    %v423 = vor.u32 1.1754944e-38, %v422
    %v424 = vsel %vm421, %v423, %v419
    %v425 = vmul.f32 1.0, %v424
    %v426 = vrcp.pop %v410
    %v427 = vmul.f32 %v410, %v426
    %v428 = vsub.f32 1.0, %v427
    %v429 = vmul.f32 %v426, %v428
    %v430 = vadd.f32 %v426, %v429
    %vm431 = vweird.f32 %v410
    %vm432 = vweird.f32 %v426
    %vm433 = vmor %vm431, %vm432
    %v434 = vsel %vm433, %v426, %v430
    %v435 = vand.u32 2147483647, %v410
    %vm436 = vcmp.eq.f32.partialorder %v435, 8.507059e+37
    %v437 = vand.u32 %v410, 2147483648
    %v438 = vor.u32 1.1754944e-38, %v437
    %v439 = vsel %vm436, %v438, %v434
    %v440 = vmul.f32 1.0, %v439
    %v441 = vtanh.pop %v401
    %v442 = vtanh.pop %v402
    %v445 = vrot.slane %v353, 7
    %v446 = vrot.slane %v354, 7
    %v449 = vmul.f32 %v425, %v445
    %v450 = vmul.f32 %v440, %v446
    %453 = vrot.lane.b32.xlu0 %v441, 64
    %v454 = vpop.permute.xlu0 %453
    %455 = vrot.lane.b32.xlu0 %v442, 64
    %v456 = vpop.permute.xlu0 %455
    %v459 = vmul.f32 %v425, %v454
    %v460 = vmul.f32 %v440, %v456
    %463 = vrot.lane.b32.xlu0 %v459, 32
    %v464 = vpop.permute.xlu0 %463
    %465 = vrot.lane.b32.xlu0 %v460, 32
    %v466 = vpop.permute.xlu0 %465
    %v469 = vadd.f32 %v449, %v464
    %v470 = vadd.f32 %v450, %v466
    %v471 = vtanh.pop %v469
    %v472 = vtanh.pop %v470
    %475 = vrot.lane.b32.xlu0 %v471, 64
    %v476 = vpop.permute.xlu0 %475
    %477 = vrot.lane.b32.xlu0 %v472, 64
    %v478 = vpop.permute.xlu0 %477
    %v481 = vmul.f32 %v425, %v476
    %v482 = vmul.f32 %v440, %v478
    %v485 = vrot.slane %v481, 3
    %v486 = vrot.slane %v482, 2
    %v487 = vsel %vm140, %v486, %v485
    %488 = vrot.lane.b32.xlu0 %v487, 32
    %v489 = vpop.permute.xlu0 %488
    %v490 = vsel %vm33, %v489, 0
    %492 = vmatpush.msra.mxu0 0.0
    %493 = vmatpush.msra.mxu0 0.0
    %494 = vmatpush.msra.mxu0 0.0
    %495 = vmatpush.msra.mxu0 0.0
    %496 = vmatpush.msra.mxu0 0.0
    %497 = vmatpush.msra.mxu0 0.0
    %498 = vmatpush.msra.mxu0 0.0
    %499 = vmatpush.msra.mxu0 0.0
    %500 = vmatpush.msra.mxu0 0.0
    %501 = vmatpush.msra.mxu0 0.0
    %502 = vmatpush.msra.mxu0 0.0
    %503 = vmatpush.msra.mxu0 0.0
    %504 = vmatpush.msra.mxu0 %v32
    %505 = vmatpush.msra.mxu0 %v31
    %506 = vmatpush.msra.mxu0 %v30
    %507 = vmatpush.msra.mxu0 %v29
    %508 = vmatmul.f32.gmra.mxu0 %v490
    %v509 = vpop.f32.mrf.mxu0
    %v510 = vadd.f32 0.0, %v509
    %511 = vdwg.mxu0
    %v513 = vrot.slane %v510, 4
    %v514 = vrot.slane %v510, 5
    %v517 = vadd.f32 %v27, %v513
    %v518 = vadd.f32 %v28, %v514
    %v519 = vxor.u32 %v517, 2147483648
    %v520 = vxor.u32 %v518, 2147483648
    %v521 = vmul.f32 %v519, 1.442695
    %v522 = vpow.pop %v521
    %v523 = vmul.f32 %v520, 1.442695
    %v524 = vpow.pop %v523
    %v525 = vadd.f32 %v522, 1.0
    %v526 = vadd.f32 %v524, 1.0
    %v527 = vrcp.pop %v525
    %v528 = vmul.f32 %v525, %v527
    %v529 = vsub.f32 1.0, %v528
    %v530 = vmul.f32 %v527, %v529
    %v531 = vadd.f32 %v527, %v530
    %vm532 = vweird.f32 %v525
    %vm533 = vweird.f32 %v527
    %vm534 = vmor %vm532, %vm533
    %v535 = vsel %vm534, %v527, %v531
    %v536 = vand.u32 2147483647, %v525
    %vm537 = vcmp.eq.f32.partialorder %v536, 8.507059e+37
    %v538 = vand.u32 %v525, 2147483648
    %v539 = vor.u32 1.1754944e-38, %v538
    %v540 = vsel %vm537, %v539, %v535
    %v541 = vmul.f32 1.0, %v540
    %v542 = vrcp.pop %v526
    %v543 = vmul.f32 %v526, %v542
    %v544 = vsub.f32 1.0, %v543
    %v545 = vmul.f32 %v542, %v544
    %v546 = vadd.f32 %v542, %v545
    %vm547 = vweird.f32 %v526
    %vm548 = vweird.f32 %v542
    %vm549 = vmor %vm547, %vm548
    %v550 = vsel %vm549, %v542, %v546
    %v551 = vand.u32 2147483647, %v526
    %vm552 = vcmp.eq.f32.partialorder %v551, 8.507059e+37
    %v553 = vand.u32 %v526, 2147483648
    %v554 = vor.u32 1.1754944e-38, %v553
    %v555 = vsel %vm552, %v554, %v550
    %v556 = vmul.f32 1.0, %v555
    %v557 = vtanh.pop %v517
    %v558 = vtanh.pop %v518
    %v561 = vrot.slane %v469, 7
    %v562 = vrot.slane %v470, 7
    %v565 = vmul.f32 %v541, %v561
    %v566 = vmul.f32 %v556, %v562
    %569 = vrot.lane.b32.xlu0 %v557, 64
    %v570 = vpop.permute.xlu0 %569
    %571 = vrot.lane.b32.xlu0 %v558, 64
    %v572 = vpop.permute.xlu0 %571
    %v575 = vmul.f32 %v541, %v570
    %v576 = vmul.f32 %v556, %v572
    %579 = vrot.lane.b32.xlu0 %v575, 32
    %v580 = vpop.permute.xlu0 %579
    %581 = vrot.lane.b32.xlu0 %v576, 32
    %v582 = vpop.permute.xlu0 %581
    %v585 = vadd.f32 %v565, %v580
    %v586 = vadd.f32 %v566, %v582
    %v587 = vtanh.pop %v585
    %v588 = vtanh.pop %v586
    %591 = vrot.lane.b32.xlu0 %v587, 64
    %v592 = vpop.permute.xlu0 %591
    %593 = vrot.lane.b32.xlu0 %v588, 64
    %v594 = vpop.permute.xlu0 %593
    %v597 = vmul.f32 %v541, %v592
    %v598 = vmul.f32 %v556, %v594
    %v601 = vrot.slane %v597, 4
    %v602 = vrot.slane %v598, 3
    %v603 = vsel %vm140, %v602, %v601
    %604 = vrot.lane.b32.xlu0 %v603, 32
    %v605 = vpop.permute.xlu0 %604
    %v606 = vsel %vm33, %v605, 0
    %608 = vmatpush.msra.mxu0 0.0
    %609 = vmatpush.msra.mxu0 0.0
    %610 = vmatpush.msra.mxu0 0.0
    %611 = vmatpush.msra.mxu0 0.0
    %612 = vmatpush.msra.mxu0 0.0
    %613 = vmatpush.msra.mxu0 0.0
    %614 = vmatpush.msra.mxu0 0.0
    %615 = vmatpush.msra.mxu0 0.0
    %616 = vmatpush.msra.mxu0 0.0
    %617 = vmatpush.msra.mxu0 0.0
    %618 = vmatpush.msra.mxu0 0.0
    %619 = vmatpush.msra.mxu0 0.0
    %620 = vmatpush.msra.mxu0 %v32
    %621 = vmatpush.msra.mxu0 %v31
    %622 = vmatpush.msra.mxu0 %v30
    %623 = vmatpush.msra.mxu0 %v29
    %624 = vmatmul.f32.gmra.mxu0 %v606
    %v625 = vpop.f32.mrf.mxu0
    %v626 = vadd.f32 0.0, %v625
    %627 = vdwg.mxu0
    %v629 = vrot.slane %v626, 3
    %v630 = vrot.slane %v626, 4
    %v633 = vadd.f32 %v27, %v629
    %v634 = vadd.f32 %v28, %v630
    %v635 = vxor.u32 %v633, 2147483648
    %v636 = vxor.u32 %v634, 2147483648
    %v637 = vmul.f32 %v635, 1.442695
    %v638 = vpow.pop %v637
    %v639 = vmul.f32 %v636, 1.442695
    %v640 = vpow.pop %v639
    %v641 = vadd.f32 %v638, 1.0
    %v642 = vadd.f32 %v640, 1.0
    %v643 = vrcp.pop %v641
    %v644 = vmul.f32 %v641, %v643
    %v645 = vsub.f32 1.0, %v644
    %v646 = vmul.f32 %v643, %v645
    %v647 = vadd.f32 %v643, %v646
    %vm648 = vweird.f32 %v641
    %vm649 = vweird.f32 %v643
    %vm650 = vmor %vm648, %vm649
    %v651 = vsel %vm650, %v643, %v647
    %v652 = vand.u32 2147483647, %v641
    %vm653 = vcmp.eq.f32.partialorder %v652, 8.507059e+37
    %v654 = vand.u32 %v641, 2147483648
    %v655 = vor.u32 1.1754944e-38, %v654
    %v656 = vsel %vm653, %v655, %v651
    %v657 = vmul.f32 1.0, %v656
    %v658 = vrcp.pop %v642
    %v659 = vmul.f32 %v642, %v658
    %v660 = vsub.f32 1.0, %v659
    %v661 = vmul.f32 %v658, %v660
    %v662 = vadd.f32 %v658, %v661
    %vm663 = vweird.f32 %v642
    %vm664 = vweird.f32 %v658
    %vm665 = vmor %vm663, %vm664
    %v666 = vsel %vm665, %v658, %v662
    %v667 = vand.u32 2147483647, %v642
    %vm668 = vcmp.eq.f32.partialorder %v667, 8.507059e+37
    %v669 = vand.u32 %v642, 2147483648
    %v670 = vor.u32 1.1754944e-38, %v669
    %v671 = vsel %vm668, %v670, %v666
    %v672 = vmul.f32 1.0, %v671
    %v673 = vtanh.pop %v633
    %v674 = vtanh.pop %v634
    %v677 = vrot.slane %v585, 7
    %v678 = vrot.slane %v586, 7
    %v681 = vmul.f32 %v657, %v677
    %v682 = vmul.f32 %v672, %v678
    %685 = vrot.lane.b32.xlu0 %v673, 64
    %v686 = vpop.permute.xlu0 %685
    %687 = vrot.lane.b32.xlu0 %v674, 64
    %v688 = vpop.permute.xlu0 %687
    %v691 = vmul.f32 %v657, %v686
    %v692 = vmul.f32 %v672, %v688
    %695 = vrot.lane.b32.xlu0 %v691, 32
    %v696 = vpop.permute.xlu0 %695
    %697 = vrot.lane.b32.xlu0 %v692, 32
    %v698 = vpop.permute.xlu0 %697
    %v701 = vadd.f32 %v681, %v696
    %v702 = vadd.f32 %v682, %v698
    %v703 = vtanh.pop %v701
    %v704 = vtanh.pop %v702
    %707 = vrot.lane.b32.xlu0 %v703, 64
    %v708 = vpop.permute.xlu0 %707
    %709 = vrot.lane.b32.xlu0 %v704, 64
    %v710 = vpop.permute.xlu0 %709
    %v713 = vmul.f32 %v657, %v708
    %v714 = vmul.f32 %v672, %v710
    %v717 = vrot.slane %v713, 5
    %v718 = vrot.slane %v714, 4
    %v719 = vsel %vm140, %v718, %v717
    %720 = vrot.lane.b32.xlu0 %v719, 32
    %v721 = vpop.permute.xlu0 %720
    %v722 = vsel %vm33, %v721, 0
    %724 = vmatpush.msra.mxu0 0.0
    %725 = vmatpush.msra.mxu0 0.0
    %726 = vmatpush.msra.mxu0 0.0
    %727 = vmatpush.msra.mxu0 0.0
    %728 = vmatpush.msra.mxu0 0.0
    %729 = vmatpush.msra.mxu0 0.0
    %730 = vmatpush.msra.mxu0 0.0
    %731 = vmatpush.msra.mxu0 0.0
    %732 = vmatpush.msra.mxu0 0.0
    %733 = vmatpush.msra.mxu0 0.0
    %734 = vmatpush.msra.mxu0 0.0
    %735 = vmatpush.msra.mxu0 0.0
    %736 = vmatpush.msra.mxu0 %v32
    %737 = vmatpush.msra.mxu0 %v31
    %738 = vmatpush.msra.mxu0 %v30
    %739 = vmatpush.msra.mxu0 %v29
    %740 = vmatmul.f32.gmra.mxu0 %v722
    %v741 = vpop.f32.mrf.mxu0
    %v742 = vadd.f32 0.0, %v741
    %743 = vdwg.mxu0
    %v745 = vrot.slane %v742, 2
    %v746 = vrot.slane %v742, 3
    %v749 = vadd.f32 %v27, %v745
    %v750 = vadd.f32 %v28, %v746
    %v751 = vxor.u32 %v749, 2147483648
    %v752 = vxor.u32 %v750, 2147483648
    %v753 = vmul.f32 %v751, 1.442695
    %v754 = vpow.pop %v753
    %v755 = vmul.f32 %v752, 1.442695
    %v756 = vpow.pop %v755
    %v757 = vadd.f32 %v754, 1.0
    %v758 = vadd.f32 %v756, 1.0
    %v759 = vrcp.pop %v757
    %v760 = vmul.f32 %v757, %v759
    %v761 = vsub.f32 1.0, %v760
    %v762 = vmul.f32 %v759, %v761
    %v763 = vadd.f32 %v759, %v762
    %vm764 = vweird.f32 %v757
    %vm765 = vweird.f32 %v759
    %vm766 = vmor %vm764, %vm765
    %v767 = vsel %vm766, %v759, %v763
    %v768 = vand.u32 2147483647, %v757
    %vm769 = vcmp.eq.f32.partialorder %v768, 8.507059e+37
    %v770 = vand.u32 %v757, 2147483648
    %v771 = vor.u32 1.1754944e-38, %v770
    %v772 = vsel %vm769, %v771, %v767
    %v773 = vmul.f32 1.0, %v772
    %v774 = vrcp.pop %v758
    %v775 = vmul.f32 %v758, %v774
    %v776 = vsub.f32 1.0, %v775
    %v777 = vmul.f32 %v774, %v776
    %v778 = vadd.f32 %v774, %v777
    %vm779 = vweird.f32 %v758
    %vm780 = vweird.f32 %v774
    %vm781 = vmor %vm779, %vm780
    %v782 = vsel %vm781, %v774, %v778
    %v783 = vand.u32 2147483647, %v758
    %vm784 = vcmp.eq.f32.partialorder %v783, 8.507059e+37
    %v785 = vand.u32 %v758, 2147483648
    %v786 = vor.u32 1.1754944e-38, %v785
    %v787 = vsel %vm784, %v786, %v782
    %v788 = vmul.f32 1.0, %v787
    %v789 = vtanh.pop %v749
    %v790 = vtanh.pop %v750
    %v793 = vrot.slane %v701, 7
    %v794 = vrot.slane %v702, 7
    %v797 = vmul.f32 %v773, %v793
    %v798 = vmul.f32 %v788, %v794
    %801 = vrot.lane.b32.xlu0 %v789, 64
    %v802 = vpop.permute.xlu0 %801
    %803 = vrot.lane.b32.xlu0 %v790, 64
    %v804 = vpop.permute.xlu0 %803
    %v807 = vmul.f32 %v773, %v802
    %v808 = vmul.f32 %v788, %v804
    %811 = vrot.lane.b32.xlu0 %v807, 32
    %v812 = vpop.permute.xlu0 %811
    %813 = vrot.lane.b32.xlu0 %v808, 32
    %v814 = vpop.permute.xlu0 %813
    %v817 = vadd.f32 %v797, %v812
    %v818 = vadd.f32 %v798, %v814
    %v819 = vtanh.pop %v817
    %v820 = vtanh.pop %v818
    %823 = vrot.lane.b32.xlu0 %v819, 64
    %v824 = vpop.permute.xlu0 %823
    %825 = vrot.lane.b32.xlu0 %v820, 64
    %v826 = vpop.permute.xlu0 %825
    %v829 = vmul.f32 %v773, %v824
    %v830 = vmul.f32 %v788, %v826
    %v833 = vrot.slane %v829, 6
    %v834 = vrot.slane %v830, 5
    %v835 = vsel %vm140, %v834, %v833
    %836 = vrot.lane.b32.xlu0 %v835, 32
    %v837 = vpop.permute.xlu0 %836
    %v838 = vsel %vm33, %v837, 0
    %840 = vmatpush.msra.mxu0 0.0
    %841 = vmatpush.msra.mxu0 0.0
    %842 = vmatpush.msra.mxu0 0.0
    %843 = vmatpush.msra.mxu0 0.0
    %844 = vmatpush.msra.mxu0 0.0
    %845 = vmatpush.msra.mxu0 0.0
    %846 = vmatpush.msra.mxu0 0.0
    %847 = vmatpush.msra.mxu0 0.0
    %848 = vmatpush.msra.mxu0 0.0
    %849 = vmatpush.msra.mxu0 0.0
    %850 = vmatpush.msra.mxu0 0.0
    %851 = vmatpush.msra.mxu0 0.0
    %852 = vmatpush.msra.mxu0 %v32
    %853 = vmatpush.msra.mxu0 %v31
    %854 = vmatpush.msra.mxu0 %v30
    %855 = vmatpush.msra.mxu0 %v29
    %856 = vmatmul.f32.gmra.mxu0 %v838
    %v857 = vpop.f32.mrf.mxu0
    %v858 = vadd.f32 0.0, %v857
    %859 = vdwg.mxu0
    %v861 = vrot.slane %v858, 1
    %v862 = vrot.slane %v858, 2
    %v865 = vadd.f32 %v27, %v861
    %v866 = vadd.f32 %v28, %v862
    %v867 = vxor.u32 %v865, 2147483648
    %v868 = vxor.u32 %v866, 2147483648
    %v869 = vmul.f32 %v867, 1.442695
    %v870 = vpow.pop %v869
    %v871 = vmul.f32 %v868, 1.442695
    %v872 = vpow.pop %v871
    %v873 = vadd.f32 %v870, 1.0
    %v874 = vadd.f32 %v872, 1.0
    %v875 = vrcp.pop %v873
    %v876 = vmul.f32 %v873, %v875
    %v877 = vsub.f32 1.0, %v876
    %v878 = vmul.f32 %v875, %v877
    %v879 = vadd.f32 %v875, %v878
    %vm880 = vweird.f32 %v873
    %vm881 = vweird.f32 %v875
    %vm882 = vmor %vm880, %vm881
    %v883 = vsel %vm882, %v875, %v879
    %v884 = vand.u32 2147483647, %v873
    %vm885 = vcmp.eq.f32.partialorder %v884, 8.507059e+37
    %v886 = vand.u32 %v873, 2147483648
    %v887 = vor.u32 1.1754944e-38, %v886
    %v888 = vsel %vm885, %v887, %v883
    %v889 = vmul.f32 1.0, %v888
    %v890 = vrcp.pop %v874
    %v891 = vmul.f32 %v874, %v890
    %v892 = vsub.f32 1.0, %v891
    %v893 = vmul.f32 %v890, %v892
    %v894 = vadd.f32 %v890, %v893
    %vm895 = vweird.f32 %v874
    %vm896 = vweird.f32 %v890
    %vm897 = vmor %vm895, %vm896
    %v898 = vsel %vm897, %v890, %v894
    %v899 = vand.u32 2147483647, %v874
    %vm900 = vcmp.eq.f32.partialorder %v899, 8.507059e+37
    %v901 = vand.u32 %v874, 2147483648
    %v902 = vor.u32 1.1754944e-38, %v901
    %v903 = vsel %vm900, %v902, %v898
    %v904 = vmul.f32 1.0, %v903
    %v905 = vtanh.pop %v865
    %v906 = vtanh.pop %v866
    %v909 = vrot.slane %v817, 7
    %v910 = vrot.slane %v818, 7
    %v913 = vmul.f32 %v889, %v909
    %v914 = vmul.f32 %v904, %v910
    %917 = vrot.lane.b32.xlu0 %v905, 64
    %v918 = vpop.permute.xlu0 %917
    %919 = vrot.lane.b32.xlu0 %v906, 64
    %v920 = vpop.permute.xlu0 %919
    %v923 = vmul.f32 %v889, %v918
    %v924 = vmul.f32 %v904, %v920
    %927 = vrot.lane.b32.xlu0 %v923, 32
    %v928 = vpop.permute.xlu0 %927
    %929 = vrot.lane.b32.xlu0 %v924, 32
    %v930 = vpop.permute.xlu0 %929
    %v933 = vadd.f32 %v913, %v928
    %v934 = vadd.f32 %v914, %v930
    %v935 = vtanh.pop %v933
    %v936 = vtanh.pop %v934
    %939 = vrot.lane.b32.xlu0 %v935, 64
    %v940 = vpop.permute.xlu0 %939
    %941 = vrot.lane.b32.xlu0 %v936, 64
    %v942 = vpop.permute.xlu0 %941
    %v945 = vmul.f32 %v889, %v940
    %v946 = vmul.f32 %v904, %v942
    %vm947 = vcmask 1040384
    %v948 = vsel %vm947, %v135, %v250
    %v949 = vsel %vm947, %v136, %v251
    %vm950 = vcmask 1041408
    %v951 = vsel %vm950, %v948, %v365
    %v952 = vsel %vm950, %v949, %v366
    %vm953 = vcmask 1042432
    %v954 = vsel %vm953, %v951, %v481
    %v955 = vsel %vm953, %v952, %v482
    %vm956 = vcmask 1043456
    %v957 = vsel %vm956, %v954, %v597
    %v958 = vsel %vm956, %v955, %v598
    %vm959 = vcmask 1044480
    %v960 = vsel %vm959, %v957, %v713
    %v961 = vsel %vm959, %v958, %v714
    %vm962 = vcmask 1045504
    %v963 = vsel %vm962, %v960, %v829
    %v964 = vsel %vm962, %v961, %v830
    %vm965 = vcmask 1046528
    %v966 = vsel %vm965, %v963, %v945
    %v967 = vsel %vm965, %v964, %v946
    %v968 = vld [vmem:[%s3] sm:$0xff]
    %v969 = vld [vmem:[%s3 + $0x8] sm:$0xff]
    %v970 = vld [vmem:[%s3 + $0x10] sm:$0xff]
    %v971 = vld [vmem:[%s3 + $0x18] sm:$0xff]
    %v972 = vld [vmem:[%s4] sm:$0x1]
    %v974 = vperm.slane %v972, 0
    %978 = vrot.lane.b32.xlu0 %v966, 32
    %v979 = vpop.permute.xlu0 %978
    %980 = vrot.lane.b32.xlu0 %v967, 32
    %v981 = vpop.permute.xlu0 %980
    %v982 = vsel %vm33, %v979, 0
    %v984 = vsel %vm33, %v981, 0
    %986 = vmatpush.msra.mxu0 0.0
    %987 = vmatpush.msra.mxu0 0.0
    %988 = vmatpush.msra.mxu0 0.0
    %989 = vmatpush.msra.mxu0 0.0
    %990 = vmatpush.msra.mxu0 0.0
    %991 = vmatpush.msra.mxu0 0.0
    %992 = vmatpush.msra.mxu0 0.0
    %993 = vmatpush.msra.mxu0 0.0
    %994 = vmatpush.msra.mxu0 0.0
    %995 = vmatpush.msra.mxu0 0.0
    %996 = vmatpush.msra.mxu0 0.0
    %997 = vmatpush.msra.mxu0 0.0
    %998 = vmatpush.msra.mxu0 %v971
    %999 = vmatpush.msra.mxu0 %v970
    %1000 = vmatpush.msra.mxu0 %v969
    %1001 = vmatpush.msra.mxu0 %v968
    %1002 = vmatmul.f32.gmra.mxu0 %v982
    %v1003 = vpop.f32.mrf.mxu0
    %v1004 = vadd.f32 %v974, %v1003
    %1005 = vmatmul.f32.gmra.mxu0 %v984
    %v1006 = vpop.f32.mrf.mxu0
    %v1007 = vadd.f32 %v974, %v1006
    %1008 = vdwg.mxu0
    %v1009 = vld [vmem:[%s2] sm:$0xff]
    %v1010 = vld [vmem:[%s2 + $0x8] sm:$0xff]
    %v1011 = vld [vmem:[%s2 + $0x10] sm:$0xff]
    %v1012 = vld [vmem:[%s2 + $0x18] sm:$0xff]
    %1013 = vmatpush.msra.mxu0 0.0
    %1014 = vmatpush.msra.mxu0 0.0
    %1015 = vmatpush.msra.mxu0 0.0
    %1016 = vmatpush.msra.mxu0 0.0
    %1017 = vmatpush.msra.mxu0 0.0
    %1018 = vmatpush.msra.mxu0 0.0
    %1019 = vmatpush.msra.mxu0 0.0
    %1020 = vmatpush.msra.mxu0 0.0
    %1021 = vmatpush.msra.mxu0 0.0
    %1022 = vmatpush.msra.mxu0 0.0
    %1023 = vmatpush.msra.mxu0 0.0
    %1024 = vmatpush.msra.mxu0 0.0
    %1025 = vmatpush.msra.mxu0 %v1012
    %1026 = vmatpush.msra.mxu0 %v1011
    %1027 = vmatpush.msra.mxu0 %v1010
    %1028 = vmatpush.msra.mxu0 %v1009
    %1029 = vmatmul.f32.gmra.mxu0 %v35
    %v1030 = vpop.f32.mrf.mxu0
    %v1031 = vadd.f32 0.0, %v1030
    %1032 = vdwg.mxu0
    %v1034 = vrot.slane %v1031, 1
    %v1037 = vadd.f32 %v1004, %v1031
    %v1038 = vadd.f32 %v1007, %v1034
    %v1039 = vxor.u32 %v1037, 2147483648
    %v1040 = vxor.u32 %v1038, 2147483648
    %v1041 = vmul.f32 %v1039, 1.442695
    %v1042 = vpow.pop %v1041
    %v1043 = vmul.f32 %v1040, 1.442695
    %v1044 = vpow.pop %v1043
    %v1045 = vadd.f32 %v1042, 1.0
    %v1046 = vadd.f32 %v1044, 1.0
    %v1047 = vrcp.pop %v1045
    %v1048 = vmul.f32 %v1045, %v1047
    %v1049 = vsub.f32 1.0, %v1048
    %v1050 = vmul.f32 %v1047, %v1049
    %v1051 = vadd.f32 %v1047, %v1050
    %vm1052 = vweird.f32 %v1045
    %vm1053 = vweird.f32 %v1047
    %vm1054 = vmor %vm1052, %vm1053
    %v1055 = vsel %vm1054, %v1047, %v1051
    %v1056 = vand.u32 2147483647, %v1045
    %vm1057 = vcmp.eq.f32.partialorder %v1056, 8.507059e+37
    %v1058 = vand.u32 %v1045, 2147483648
    %v1059 = vor.u32 1.1754944e-38, %v1058
    %v1060 = vsel %vm1057, %v1059, %v1055
    %v1061 = vmul.f32 1.0, %v1060
    %v1062 = vrcp.pop %v1046
    %v1063 = vmul.f32 %v1046, %v1062
    %v1064 = vsub.f32 1.0, %v1063
    %v1065 = vmul.f32 %v1062, %v1064
    %v1066 = vadd.f32 %v1062, %v1065
    %vm1067 = vweird.f32 %v1046
    %vm1068 = vweird.f32 %v1062
    %vm1069 = vmor %vm1067, %vm1068
    %v1070 = vsel %vm1069, %v1062, %v1066
    %v1071 = vand.u32 2147483647, %v1046
    %vm1072 = vcmp.eq.f32.partialorder %v1071, 8.507059e+37
    %v1073 = vand.u32 %v1046, 2147483648
    %v1074 = vor.u32 1.1754944e-38, %v1073
    %v1075 = vsel %vm1072, %v1074, %v1070
    %v1076 = vmul.f32 1.0, %v1075
    %v1077 = vtanh.pop %v1037
    %v1078 = vtanh.pop %v1038
    %v1079 = vmul.f32 %v1061, 0.0
    %v1080 = vmul.f32 %v1076, 0.0
    %1083 = vrot.lane.b32.xlu0 %v1077, 64
    %v1084 = vpop.permute.xlu0 %1083
    %1085 = vrot.lane.b32.xlu0 %v1078, 64
    %v1086 = vpop.permute.xlu0 %1085
    %v1089 = vmul.f32 %v1061, %v1084
    %v1090 = vmul.f32 %v1076, %v1086
    %1093 = vrot.lane.b32.xlu0 %v1089, 32
    %v1094 = vpop.permute.xlu0 %1093
    %1095 = vrot.lane.b32.xlu0 %v1090, 32
    %v1096 = vpop.permute.xlu0 %1095
    %v1099 = vadd.f32 %v1079, %v1094
    %v1100 = vadd.f32 %v1080, %v1096
    %v1101 = vtanh.pop %v1099
    %v1102 = vtanh.pop %v1100
    %1105 = vrot.lane.b32.xlu0 %v1101, 64
    %v1106 = vpop.permute.xlu0 %1105
    %1107 = vrot.lane.b32.xlu0 %v1102, 64
    %v1108 = vpop.permute.xlu0 %1107
    %v1111 = vmul.f32 %v1061, %v1106
    %v1112 = vmul.f32 %v1076, %v1108
    %v1115 = vrot.slane %v1112, 7
    %v1116 = vsel %vm140, %v1115, %v1111
    %1117 = vrot.lane.b32.xlu0 %v1116, 32
    %v1118 = vpop.permute.xlu0 %1117
    %v1119 = vsel %vm33, %v1118, 0
    %1121 = vmatpush.msra.mxu0 0.0
    %1122 = vmatpush.msra.mxu0 0.0
    %1123 = vmatpush.msra.mxu0 0.0
    %1124 = vmatpush.msra.mxu0 0.0
    %1125 = vmatpush.msra.mxu0 0.0
    %1126 = vmatpush.msra.mxu0 0.0
    %1127 = vmatpush.msra.mxu0 0.0
    %1128 = vmatpush.msra.mxu0 0.0
    %1129 = vmatpush.msra.mxu0 0.0
    %1130 = vmatpush.msra.mxu0 0.0
    %1131 = vmatpush.msra.mxu0 0.0
    %1132 = vmatpush.msra.mxu0 0.0
    %1133 = vmatpush.msra.mxu0 %v1012
    %1134 = vmatpush.msra.mxu0 %v1011
    %1135 = vmatpush.msra.mxu0 %v1010
    %1136 = vmatpush.msra.mxu0 %v1009
    %1137 = vmatmul.f32.gmra.mxu0 %v1119
    %v1138 = vpop.f32.mrf.mxu0
    %v1139 = vadd.f32 0.0, %v1138
    %1140 = vdwg.mxu0
    %v1142 = vrot.slane %v1139, 7
    %v1145 = vadd.f32 %v1004, %v1142
    %v1146 = vadd.f32 %v1007, %v1139
    %v1147 = vxor.u32 %v1145, 2147483648
    %v1148 = vxor.u32 %v1146, 2147483648
    %v1149 = vmul.f32 %v1147, 1.442695
    %v1150 = vpow.pop %v1149
    %v1151 = vmul.f32 %v1148, 1.442695
    %v1152 = vpow.pop %v1151
    %v1153 = vadd.f32 %v1150, 1.0
    %v1154 = vadd.f32 %v1152, 1.0
    %v1155 = vrcp.pop %v1153
    %v1156 = vmul.f32 %v1153, %v1155
    %v1157 = vsub.f32 1.0, %v1156
    %v1158 = vmul.f32 %v1155, %v1157
    %v1159 = vadd.f32 %v1155, %v1158
    %vm1160 = vweird.f32 %v1153
    %vm1161 = vweird.f32 %v1155
    %vm1162 = vmor %vm1160, %vm1161
    %v1163 = vsel %vm1162, %v1155, %v1159
    %v1164 = vand.u32 2147483647, %v1153
    %vm1165 = vcmp.eq.f32.partialorder %v1164, 8.507059e+37
    %v1166 = vand.u32 %v1153, 2147483648
    %v1167 = vor.u32 1.1754944e-38, %v1166
    %v1168 = vsel %vm1165, %v1167, %v1163
    %v1169 = vmul.f32 1.0, %v1168
    %v1170 = vrcp.pop %v1154
    %v1171 = vmul.f32 %v1154, %v1170
    %v1172 = vsub.f32 1.0, %v1171
    %v1173 = vmul.f32 %v1170, %v1172
    %v1174 = vadd.f32 %v1170, %v1173
    %vm1175 = vweird.f32 %v1154
    %vm1176 = vweird.f32 %v1170
    %vm1177 = vmor %vm1175, %vm1176
    %v1178 = vsel %vm1177, %v1170, %v1174
    %v1179 = vand.u32 2147483647, %v1154
    %vm1180 = vcmp.eq.f32.partialorder %v1179, 8.507059e+37
    %v1181 = vand.u32 %v1154, 2147483648
    %v1182 = vor.u32 1.1754944e-38, %v1181
    %v1183 = vsel %vm1180, %v1182, %v1178
    %v1184 = vmul.f32 1.0, %v1183
    %v1185 = vtanh.pop %v1145
    %v1186 = vtanh.pop %v1146
    %v1189 = vrot.slane %v1099, 7
    %v1190 = vrot.slane %v1100, 7
    %v1193 = vmul.f32 %v1169, %v1189
    %v1194 = vmul.f32 %v1184, %v1190
    %1197 = vrot.lane.b32.xlu0 %v1185, 64
    %v1198 = vpop.permute.xlu0 %1197
    %1199 = vrot.lane.b32.xlu0 %v1186, 64
    %v1200 = vpop.permute.xlu0 %1199
    %v1203 = vmul.f32 %v1169, %v1198
    %v1204 = vmul.f32 %v1184, %v1200
    %1207 = vrot.lane.b32.xlu0 %v1203, 32
    %v1208 = vpop.permute.xlu0 %1207
    %1209 = vrot.lane.b32.xlu0 %v1204, 32
    %v1210 = vpop.permute.xlu0 %1209
    %v1213 = vadd.f32 %v1193, %v1208
    %v1214 = vadd.f32 %v1194, %v1210
    %v1215 = vtanh.pop %v1213
    %v1216 = vtanh.pop %v1214
    %1219 = vrot.lane.b32.xlu0 %v1215, 64
    %v1220 = vpop.permute.xlu0 %1219
    %1221 = vrot.lane.b32.xlu0 %v1216, 64
    %v1222 = vpop.permute.xlu0 %1221
    %v1225 = vmul.f32 %v1169, %v1220
    %v1226 = vmul.f32 %v1184, %v1222
    %v1229 = vrot.slane %v1225, 1
    %v1230 = vsel %vm140, %v1226, %v1229
    %1231 = vrot.lane.b32.xlu0 %v1230, 32
    %v1232 = vpop.permute.xlu0 %1231
    %v1233 = vsel %vm33, %v1232, 0
    %1235 = vmatpush.msra.mxu0 0.0
    %1236 = vmatpush.msra.mxu0 0.0
    %1237 = vmatpush.msra.mxu0 0.0
    %1238 = vmatpush.msra.mxu0 0.0
    %1239 = vmatpush.msra.mxu0 0.0
    %1240 = vmatpush.msra.mxu0 0.0
    %1241 = vmatpush.msra.mxu0 0.0
    %1242 = vmatpush.msra.mxu0 0.0
    %1243 = vmatpush.msra.mxu0 0.0
    %1244 = vmatpush.msra.mxu0 0.0
    %1245 = vmatpush.msra.mxu0 0.0
    %1246 = vmatpush.msra.mxu0 0.0
    %1247 = vmatpush.msra.mxu0 %v1012
    %1248 = vmatpush.msra.mxu0 %v1011
    %1249 = vmatpush.msra.mxu0 %v1010
    %1250 = vmatpush.msra.mxu0 %v1009
    %1251 = vmatmul.f32.gmra.mxu0 %v1233
    %v1252 = vpop.f32.mrf.mxu0
    %v1253 = vadd.f32 0.0, %v1252
    %1254 = vdwg.mxu0
    %v1256 = vrot.slane %v1253, 6
    %v1257 = vrot.slane %v1253, 7
    %v1260 = vadd.f32 %v1004, %v1256
    %v1261 = vadd.f32 %v1007, %v1257
    %v1262 = vxor.u32 %v1260, 2147483648
    %v1263 = vxor.u32 %v1261, 2147483648
    %v1264 = vmul.f32 %v1262, 1.442695
    %v1265 = vpow.pop %v1264
    %v1266 = vmul.f32 %v1263, 1.442695
    %v1267 = vpow.pop %v1266
    %v1268 = vadd.f32 %v1265, 1.0
    %v1269 = vadd.f32 %v1267, 1.0
    %v1270 = vrcp.pop %v1268
    %v1271 = vmul.f32 %v1268, %v1270
    %v1272 = vsub.f32 1.0, %v1271
    %v1273 = vmul.f32 %v1270, %v1272
    %v1274 = vadd.f32 %v1270, %v1273
    %vm1275 = vweird.f32 %v1268
    %vm1276 = vweird.f32 %v1270
    %vm1277 = vmor %vm1275, %vm1276
    %v1278 = vsel %vm1277, %v1270, %v1274
    %v1279 = vand.u32 2147483647, %v1268
    %vm1280 = vcmp.eq.f32.partialorder %v1279, 8.507059e+37
    %v1281 = vand.u32 %v1268, 2147483648
    %v1282 = vor.u32 1.1754944e-38, %v1281
    %v1283 = vsel %vm1280, %v1282, %v1278
    %v1284 = vmul.f32 1.0, %v1283
    %v1285 = vrcp.pop %v1269
    %v1286 = vmul.f32 %v1269, %v1285
    %v1287 = vsub.f32 1.0, %v1286
    %v1288 = vmul.f32 %v1285, %v1287
    %v1289 = vadd.f32 %v1285, %v1288
    %vm1290 = vweird.f32 %v1269
    %vm1291 = vweird.f32 %v1285
    %vm1292 = vmor %vm1290, %vm1291
    %v1293 = vsel %vm1292, %v1285, %v1289
    %v1294 = vand.u32 2147483647, %v1269
    %vm1295 = vcmp.eq.f32.partialorder %v1294, 8.507059e+37
    %v1296 = vand.u32 %v1269, 2147483648
    %v1297 = vor.u32 1.1754944e-38, %v1296
    %v1298 = vsel %vm1295, %v1297, %v1293
    %v1299 = vmul.f32 1.0, %v1298
    %v1300 = vtanh.pop %v1260
    %v1301 = vtanh.pop %v1261
    %v1304 = vrot.slane %v1213, 7
    %v1305 = vrot.slane %v1214, 7
    %v1308 = vmul.f32 %v1284, %v1304
    %v1309 = vmul.f32 %v1299, %v1305
    %1312 = vrot.lane.b32.xlu0 %v1300, 64
    %v1313 = vpop.permute.xlu0 %1312
    %1314 = vrot.lane.b32.xlu0 %v1301, 64
    %v1315 = vpop.permute.xlu0 %1314
    %v1318 = vmul.f32 %v1284, %v1313
    %v1319 = vmul.f32 %v1299, %v1315
    %1322 = vrot.lane.b32.xlu0 %v1318, 32
    %v1323 = vpop.permute.xlu0 %1322
    %1324 = vrot.lane.b32.xlu0 %v1319, 32
    %v1325 = vpop.permute.xlu0 %1324
    %v1328 = vadd.f32 %v1308, %v1323
    %v1329 = vadd.f32 %v1309, %v1325
    %v1330 = vtanh.pop %v1328
    %v1331 = vtanh.pop %v1329
    %1334 = vrot.lane.b32.xlu0 %v1330, 64
    %v1335 = vpop.permute.xlu0 %1334
    %1336 = vrot.lane.b32.xlu0 %v1331, 64
    %v1337 = vpop.permute.xlu0 %1336
    %v1340 = vmul.f32 %v1284, %v1335
    %v1341 = vmul.f32 %v1299, %v1337
    %v1344 = vrot.slane %v1340, 2
    %v1345 = vrot.slane %v1341, 1
    %v1346 = vsel %vm140, %v1345, %v1344
    %1347 = vrot.lane.b32.xlu0 %v1346, 32
    %v1348 = vpop.permute.xlu0 %1347
    %v1349 = vsel %vm33, %v1348, 0
    %1351 = vmatpush.msra.mxu0 0.0
    %1352 = vmatpush.msra.mxu0 0.0
    %1353 = vmatpush.msra.mxu0 0.0
    %1354 = vmatpush.msra.mxu0 0.0
    %1355 = vmatpush.msra.mxu0 0.0
    %1356 = vmatpush.msra.mxu0 0.0
    %1357 = vmatpush.msra.mxu0 0.0
    %1358 = vmatpush.msra.mxu0 0.0
    %1359 = vmatpush.msra.mxu0 0.0
    %1360 = vmatpush.msra.mxu0 0.0
    %1361 = vmatpush.msra.mxu0 0.0
    %1362 = vmatpush.msra.mxu0 0.0
    %1363 = vmatpush.msra.mxu0 %v1012
    %1364 = vmatpush.msra.mxu0 %v1011
    %1365 = vmatpush.msra.mxu0 %v1010
    %1366 = vmatpush.msra.mxu0 %v1009
    %1367 = vmatmul.f32.gmra.mxu0 %v1349
    %v1368 = vpop.f32.mrf.mxu0
    %v1369 = vadd.f32 0.0, %v1368
    %1370 = vdwg.mxu0
    %v1372 = vrot.slane %v1369, 5
    %v1373 = vrot.slane %v1369, 6
    %v1376 = vadd.f32 %v1004, %v1372
    %v1377 = vadd.f32 %v1007, %v1373
    %v1378 = vxor.u32 %v1376, 2147483648
    %v1379 = vxor.u32 %v1377, 2147483648
    %v1380 = vmul.f32 %v1378, 1.442695
    %v1381 = vpow.pop %v1380
    %v1382 = vmul.f32 %v1379, 1.442695
    %v1383 = vpow.pop %v1382
    %v1384 = vadd.f32 %v1381, 1.0
    %v1385 = vadd.f32 %v1383, 1.0
    %v1386 = vrcp.pop %v1384
    %v1387 = vmul.f32 %v1384, %v1386
    %v1388 = vsub.f32 1.0, %v1387
    %v1389 = vmul.f32 %v1386, %v1388
    %v1390 = vadd.f32 %v1386, %v1389
    %vm1391 = vweird.f32 %v1384
    %vm1392 = vweird.f32 %v1386
    %vm1393 = vmor %vm1391, %vm1392
    %v1394 = vsel %vm1393, %v1386, %v1390
    %v1395 = vand.u32 2147483647, %v1384
    %vm1396 = vcmp.eq.f32.partialorder %v1395, 8.507059e+37
    %v1397 = vand.u32 %v1384, 2147483648
    %v1398 = vor.u32 1.1754944e-38, %v1397
    %v1399 = vsel %vm1396, %v1398, %v1394
    %v1400 = vmul.f32 1.0, %v1399
    %v1401 = vrcp.pop %v1385
    %v1402 = vmul.f32 %v1385, %v1401
    %v1403 = vsub.f32 1.0, %v1402
    %v1404 = vmul.f32 %v1401, %v1403
    %v1405 = vadd.f32 %v1401, %v1404
    %vm1406 = vweird.f32 %v1385
    %vm1407 = vweird.f32 %v1401
    %vm1408 = vmor %vm1406, %vm1407
    %v1409 = vsel %vm1408, %v1401, %v1405
    %v1410 = vand.u32 2147483647, %v1385
    %vm1411 = vcmp.eq.f32.partialorder %v1410, 8.507059e+37
    %v1412 = vand.u32 %v1385, 2147483648
    %v1413 = vor.u32 1.1754944e-38, %v1412
    %v1414 = vsel %vm1411, %v1413, %v1409
    %v1415 = vmul.f32 1.0, %v1414
    %v1416 = vtanh.pop %v1376
    %v1417 = vtanh.pop %v1377
    %v1420 = vrot.slane %v1328, 7
    %v1421 = vrot.slane %v1329, 7
    %v1424 = vmul.f32 %v1400, %v1420
    %v1425 = vmul.f32 %v1415, %v1421
    %1428 = vrot.lane.b32.xlu0 %v1416, 64
    %v1429 = vpop.permute.xlu0 %1428
    %1430 = vrot.lane.b32.xlu0 %v1417, 64
    %v1431 = vpop.permute.xlu0 %1430
    %v1434 = vmul.f32 %v1400, %v1429
    %v1435 = vmul.f32 %v1415, %v1431
    %1438 = vrot.lane.b32.xlu0 %v1434, 32
    %v1439 = vpop.permute.xlu0 %1438
    %1440 = vrot.lane.b32.xlu0 %v1435, 32
    %v1441 = vpop.permute.xlu0 %1440
    %v1444 = vadd.f32 %v1424, %v1439
    %v1445 = vadd.f32 %v1425, %v1441
    %v1446 = vtanh.pop %v1444
    %v1447 = vtanh.pop %v1445
    %1450 = vrot.lane.b32.xlu0 %v1446, 64
    %v1451 = vpop.permute.xlu0 %1450
    %1452 = vrot.lane.b32.xlu0 %v1447, 64
    %v1453 = vpop.permute.xlu0 %1452
    %v1456 = vmul.f32 %v1400, %v1451
    %v1457 = vmul.f32 %v1415, %v1453
    %v1460 = vrot.slane %v1456, 3
    %v1461 = vrot.slane %v1457, 2
    %v1462 = vsel %vm140, %v1461, %v1460
    %1463 = vrot.lane.b32.xlu0 %v1462, 32
    %v1464 = vpop.permute.xlu0 %1463
    %v1465 = vsel %vm33, %v1464, 0
    %1467 = vmatpush.msra.mxu0 0.0
    %1468 = vmatpush.msra.mxu0 0.0
    %1469 = vmatpush.msra.mxu0 0.0
    %1470 = vmatpush.msra.mxu0 0.0
    %1471 = vmatpush.msra.mxu0 0.0
    %1472 = vmatpush.msra.mxu0 0.0
    %1473 = vmatpush.msra.mxu0 0.0
    %1474 = vmatpush.msra.mxu0 0.0
    %1475 = vmatpush.msra.mxu0 0.0
    %1476 = vmatpush.msra.mxu0 0.0
    %1477 = vmatpush.msra.mxu0 0.0
    %1478 = vmatpush.msra.mxu0 0.0
    %1479 = vmatpush.msra.mxu0 %v1012
    %1480 = vmatpush.msra.mxu0 %v1011
    %1481 = vmatpush.msra.mxu0 %v1010
    %1482 = vmatpush.msra.mxu0 %v1009
    %1483 = vmatmul.f32.gmra.mxu0 %v1465
    %v1484 = vpop.f32.mrf.mxu0
    %v1485 = vadd.f32 0.0, %v1484
    %1486 = vdwg.mxu0
    %v1488 = vrot.slane %v1485, 4
    %v1489 = vrot.slane %v1485, 5
    %v1492 = vadd.f32 %v1004, %v1488
    %v1493 = vadd.f32 %v1007, %v1489
    %v1494 = vxor.u32 %v1492, 2147483648
    %v1495 = vxor.u32 %v1493, 2147483648
    %v1496 = vmul.f32 %v1494, 1.442695
    %v1497 = vpow.pop %v1496
    %v1498 = vmul.f32 %v1495, 1.442695
    %v1499 = vpow.pop %v1498
    %v1500 = vadd.f32 %v1497, 1.0
    %v1501 = vadd.f32 %v1499, 1.0
    %v1502 = vrcp.pop %v1500
    %v1503 = vmul.f32 %v1500, %v1502
    %v1504 = vsub.f32 1.0, %v1503
    %v1505 = vmul.f32 %v1502, %v1504
    %v1506 = vadd.f32 %v1502, %v1505
    %vm1507 = vweird.f32 %v1500
    %vm1508 = vweird.f32 %v1502
    %vm1509 = vmor %vm1507, %vm1508
    %v1510 = vsel %vm1509, %v1502, %v1506
    %v1511 = vand.u32 2147483647, %v1500
    %vm1512 = vcmp.eq.f32.partialorder %v1511, 8.507059e+37
    %v1513 = vand.u32 %v1500, 2147483648
    %v1514 = vor.u32 1.1754944e-38, %v1513
    %v1515 = vsel %vm1512, %v1514, %v1510
    %v1516 = vmul.f32 1.0, %v1515
    %v1517 = vrcp.pop %v1501
    %v1518 = vmul.f32 %v1501, %v1517
    %v1519 = vsub.f32 1.0, %v1518
    %v1520 = vmul.f32 %v1517, %v1519
    %v1521 = vadd.f32 %v1517, %v1520
    %vm1522 = vweird.f32 %v1501
    %vm1523 = vweird.f32 %v1517
    %vm1524 = vmor %vm1522, %vm1523
    %v1525 = vsel %vm1524, %v1517, %v1521
    %v1526 = vand.u32 2147483647, %v1501
    %vm1527 = vcmp.eq.f32.partialorder %v1526, 8.507059e+37
    %v1528 = vand.u32 %v1501, 2147483648
    %v1529 = vor.u32 1.1754944e-38, %v1528
    %v1530 = vsel %vm1527, %v1529, %v1525
    %v1531 = vmul.f32 1.0, %v1530
    %v1532 = vtanh.pop %v1492
    %v1533 = vtanh.pop %v1493
    %v1536 = vrot.slane %v1444, 7
    %v1537 = vrot.slane %v1445, 7
    %v1540 = vmul.f32 %v1516, %v1536
    %v1541 = vmul.f32 %v1531, %v1537
    %1544 = vrot.lane.b32.xlu0 %v1532, 64
    %v1545 = vpop.permute.xlu0 %1544
    %1546 = vrot.lane.b32.xlu0 %v1533, 64
    %v1547 = vpop.permute.xlu0 %1546
    %v1550 = vmul.f32 %v1516, %v1545
    %v1551 = vmul.f32 %v1531, %v1547
    %1554 = vrot.lane.b32.xlu0 %v1550, 32
    %v1555 = vpop.permute.xlu0 %1554
    %1556 = vrot.lane.b32.xlu0 %v1551, 32
    %v1557 = vpop.permute.xlu0 %1556
    %v1560 = vadd.f32 %v1540, %v1555
    %v1561 = vadd.f32 %v1541, %v1557
    %v1562 = vtanh.pop %v1560
    %v1563 = vtanh.pop %v1561
    %1566 = vrot.lane.b32.xlu0 %v1562, 64
    %v1567 = vpop.permute.xlu0 %1566
    %1568 = vrot.lane.b32.xlu0 %v1563, 64
    %v1569 = vpop.permute.xlu0 %1568
    %v1572 = vmul.f32 %v1516, %v1567
    %v1573 = vmul.f32 %v1531, %v1569
    %v1576 = vrot.slane %v1572, 4
    %v1577 = vrot.slane %v1573, 3
    %v1578 = vsel %vm140, %v1577, %v1576
    %1579 = vrot.lane.b32.xlu0 %v1578, 32
    %v1580 = vpop.permute.xlu0 %1579
    %v1581 = vsel %vm33, %v1580, 0
    %1583 = vmatpush.msra.mxu0 0.0
    %1584 = vmatpush.msra.mxu0 0.0
    %1585 = vmatpush.msra.mxu0 0.0
    %1586 = vmatpush.msra.mxu0 0.0
    %1587 = vmatpush.msra.mxu0 0.0
    %1588 = vmatpush.msra.mxu0 0.0
    %1589 = vmatpush.msra.mxu0 0.0
    %1590 = vmatpush.msra.mxu0 0.0
    %1591 = vmatpush.msra.mxu0 0.0
    %1592 = vmatpush.msra.mxu0 0.0
    %1593 = vmatpush.msra.mxu0 0.0
    %1594 = vmatpush.msra.mxu0 0.0
    %1595 = vmatpush.msra.mxu0 %v1012
    %1596 = vmatpush.msra.mxu0 %v1011
    %1597 = vmatpush.msra.mxu0 %v1010
    %1598 = vmatpush.msra.mxu0 %v1009
    %1599 = vmatmul.f32.gmra.mxu0 %v1581
    %v1600 = vpop.f32.mrf.mxu0
    %v1601 = vadd.f32 0.0, %v1600
    %1602 = vdwg.mxu0
    %v1604 = vrot.slane %v1601, 3
    %v1605 = vrot.slane %v1601, 4
    %v1608 = vadd.f32 %v1004, %v1604
    %v1609 = vadd.f32 %v1007, %v1605
    %v1610 = vxor.u32 %v1608, 2147483648
    %v1611 = vxor.u32 %v1609, 2147483648
    %v1612 = vmul.f32 %v1610, 1.442695
    %v1613 = vpow.pop %v1612
    %v1614 = vmul.f32 %v1611, 1.442695
    %v1615 = vpow.pop %v1614
    %v1616 = vadd.f32 %v1613, 1.0
    %v1617 = vadd.f32 %v1615, 1.0
    %v1618 = vrcp.pop %v1616
    %v1619 = vmul.f32 %v1616, %v1618
    %v1620 = vsub.f32 1.0, %v1619
    %v1621 = vmul.f32 %v1618, %v1620
    %v1622 = vadd.f32 %v1618, %v1621
    %vm1623 = vweird.f32 %v1616
    %vm1624 = vweird.f32 %v1618
    %vm1625 = vmor %vm1623, %vm1624
    %v1626 = vsel %vm1625, %v1618, %v1622
    %v1627 = vand.u32 2147483647, %v1616
    %vm1628 = vcmp.eq.f32.partialorder %v1627, 8.507059e+37
    %v1629 = vand.u32 %v1616, 2147483648
    %v1630 = vor.u32 1.1754944e-38, %v1629
    %v1631 = vsel %vm1628, %v1630, %v1626
    %v1632 = vmul.f32 1.0, %v1631
    %v1633 = vrcp.pop %v1617
    %v1634 = vmul.f32 %v1617, %v1633
    %v1635 = vsub.f32 1.0, %v1634
    %v1636 = vmul.f32 %v1633, %v1635
    %v1637 = vadd.f32 %v1633, %v1636
    %vm1638 = vweird.f32 %v1617
    %vm1639 = vweird.f32 %v1633
    %vm1640 = vmor %vm1638, %vm1639
    %v1641 = vsel %vm1640, %v1633, %v1637
    %v1642 = vand.u32 2147483647, %v1617
    %vm1643 = vcmp.eq.f32.partialorder %v1642, 8.507059e+37
    %v1644 = vand.u32 %v1617, 2147483648
    %v1645 = vor.u32 1.1754944e-38, %v1644
    %v1646 = vsel %vm1643, %v1645, %v1641
    %v1647 = vmul.f32 1.0, %v1646
    %v1648 = vtanh.pop %v1608
    %v1649 = vtanh.pop %v1609
    %v1652 = vrot.slane %v1560, 7
    %v1653 = vrot.slane %v1561, 7
    %v1656 = vmul.f32 %v1632, %v1652
    %v1657 = vmul.f32 %v1647, %v1653
    %1660 = vrot.lane.b32.xlu0 %v1648, 64
    %v1661 = vpop.permute.xlu0 %1660
    %1662 = vrot.lane.b32.xlu0 %v1649, 64
    %v1663 = vpop.permute.xlu0 %1662
    %v1666 = vmul.f32 %v1632, %v1661
    %v1667 = vmul.f32 %v1647, %v1663
    %1670 = vrot.lane.b32.xlu0 %v1666, 32
    %v1671 = vpop.permute.xlu0 %1670
    %1672 = vrot.lane.b32.xlu0 %v1667, 32
    %v1673 = vpop.permute.xlu0 %1672
    %v1676 = vadd.f32 %v1656, %v1671
    %v1677 = vadd.f32 %v1657, %v1673
    %v1678 = vtanh.pop %v1676
    %v1679 = vtanh.pop %v1677
    %1682 = vrot.lane.b32.xlu0 %v1678, 64
    %v1683 = vpop.permute.xlu0 %1682
    %1684 = vrot.lane.b32.xlu0 %v1679, 64
    %v1685 = vpop.permute.xlu0 %1684
    %v1688 = vmul.f32 %v1632, %v1683
    %v1689 = vmul.f32 %v1647, %v1685
    %v1692 = vrot.slane %v1688, 5
    %v1693 = vrot.slane %v1689, 4
    %v1694 = vsel %vm140, %v1693, %v1692
    %1695 = vrot.lane.b32.xlu0 %v1694, 32
    %v1696 = vpop.permute.xlu0 %1695
    %v1697 = vsel %vm33, %v1696, 0
    %1699 = vmatpush.msra.mxu0 0.0
    %1700 = vmatpush.msra.mxu0 0.0
    %1701 = vmatpush.msra.mxu0 0.0
    %1702 = vmatpush.msra.mxu0 0.0
    %1703 = vmatpush.msra.mxu0 0.0
    %1704 = vmatpush.msra.mxu0 0.0
    %1705 = vmatpush.msra.mxu0 0.0
    %1706 = vmatpush.msra.mxu0 0.0
    %1707 = vmatpush.msra.mxu0 0.0
    %1708 = vmatpush.msra.mxu0 0.0
    %1709 = vmatpush.msra.mxu0 0.0
    %1710 = vmatpush.msra.mxu0 0.0
    %1711 = vmatpush.msra.mxu0 %v1012
    %1712 = vmatpush.msra.mxu0 %v1011
    %1713 = vmatpush.msra.mxu0 %v1010
    %1714 = vmatpush.msra.mxu0 %v1009
    %1715 = vmatmul.f32.gmra.mxu0 %v1697
    %v1716 = vpop.f32.mrf.mxu0
    %v1717 = vadd.f32 0.0, %v1716
    %1718 = vdwg.mxu0
    %v1720 = vrot.slane %v1717, 2
    %v1721 = vrot.slane %v1717, 3
    %v1724 = vadd.f32 %v1004, %v1720
    %v1725 = vadd.f32 %v1007, %v1721
    %v1726 = vxor.u32 %v1724, 2147483648
    %v1727 = vxor.u32 %v1725, 2147483648
    %v1728 = vmul.f32 %v1726, 1.442695
    %v1729 = vpow.pop %v1728
    %v1730 = vmul.f32 %v1727, 1.442695
    %v1731 = vpow.pop %v1730
    %v1732 = vadd.f32 %v1729, 1.0
    %v1733 = vadd.f32 %v1731, 1.0
    %v1734 = vrcp.pop %v1732
    %v1735 = vmul.f32 %v1732, %v1734
    %v1736 = vsub.f32 1.0, %v1735
    %v1737 = vmul.f32 %v1734, %v1736
    %v1738 = vadd.f32 %v1734, %v1737
    %vm1739 = vweird.f32 %v1732
    %vm1740 = vweird.f32 %v1734
    %vm1741 = vmor %vm1739, %vm1740
    %v1742 = vsel %vm1741, %v1734, %v1738
    %v1743 = vand.u32 2147483647, %v1732
    %vm1744 = vcmp.eq.f32.partialorder %v1743, 8.507059e+37
    %v1745 = vand.u32 %v1732, 2147483648
    %v1746 = vor.u32 1.1754944e-38, %v1745
    %v1747 = vsel %vm1744, %v1746, %v1742
    %v1748 = vmul.f32 1.0, %v1747
    %v1749 = vrcp.pop %v1733
    %v1750 = vmul.f32 %v1733, %v1749
    %v1751 = vsub.f32 1.0, %v1750
    %v1752 = vmul.f32 %v1749, %v1751
    %v1753 = vadd.f32 %v1749, %v1752
    %vm1754 = vweird.f32 %v1733
    %vm1755 = vweird.f32 %v1749
    %vm1756 = vmor %vm1754, %vm1755
    %v1757 = vsel %vm1756, %v1749, %v1753
    %v1758 = vand.u32 2147483647, %v1733
    %vm1759 = vcmp.eq.f32.partialorder %v1758, 8.507059e+37
    %v1760 = vand.u32 %v1733, 2147483648
    %v1761 = vor.u32 1.1754944e-38, %v1760
    %v1762 = vsel %vm1759, %v1761, %v1757
    %v1763 = vmul.f32 1.0, %v1762
    %v1764 = vtanh.pop %v1724
    %v1765 = vtanh.pop %v1725
    %v1768 = vrot.slane %v1676, 7
    %v1769 = vrot.slane %v1677, 7
    %v1772 = vmul.f32 %v1748, %v1768
    %v1773 = vmul.f32 %v1763, %v1769
    %1776 = vrot.lane.b32.xlu0 %v1764, 64
    %v1777 = vpop.permute.xlu0 %1776
    %1778 = vrot.lane.b32.xlu0 %v1765, 64
    %v1779 = vpop.permute.xlu0 %1778
    %v1782 = vmul.f32 %v1748, %v1777
    %v1783 = vmul.f32 %v1763, %v1779
    %1786 = vrot.lane.b32.xlu0 %v1782, 32
    %v1787 = vpop.permute.xlu0 %1786
    %1788 = vrot.lane.b32.xlu0 %v1783, 32
    %v1789 = vpop.permute.xlu0 %1788
    %v1792 = vadd.f32 %v1772, %v1787
    %v1793 = vadd.f32 %v1773, %v1789
    %v1794 = vtanh.pop %v1792
    %v1795 = vtanh.pop %v1793
    %1798 = vrot.lane.b32.xlu0 %v1794, 64
    %v1799 = vpop.permute.xlu0 %1798
    %1800 = vrot.lane.b32.xlu0 %v1795, 64
    %v1801 = vpop.permute.xlu0 %1800
    %v1804 = vmul.f32 %v1748, %v1799
    %v1805 = vmul.f32 %v1763, %v1801
    %v1808 = vrot.slane %v1804, 6
    %v1809 = vrot.slane %v1805, 5
    %v1810 = vsel %vm140, %v1809, %v1808
    %1811 = vrot.lane.b32.xlu0 %v1810, 32
    %v1812 = vpop.permute.xlu0 %1811
    %v1813 = vsel %vm33, %v1812, 0
    %1815 = vmatpush.msra.mxu0 0.0
    %1816 = vmatpush.msra.mxu0 0.0
    %1817 = vmatpush.msra.mxu0 0.0
    %1818 = vmatpush.msra.mxu0 0.0
    %1819 = vmatpush.msra.mxu0 0.0
    %1820 = vmatpush.msra.mxu0 0.0
    %1821 = vmatpush.msra.mxu0 0.0
    %1822 = vmatpush.msra.mxu0 0.0
    %1823 = vmatpush.msra.mxu0 0.0
    %1824 = vmatpush.msra.mxu0 0.0
    %1825 = vmatpush.msra.mxu0 0.0
    %1826 = vmatpush.msra.mxu0 0.0
    %1827 = vmatpush.msra.mxu0 %v1012
    %1828 = vmatpush.msra.mxu0 %v1011
    %1829 = vmatpush.msra.mxu0 %v1010
    %1830 = vmatpush.msra.mxu0 %v1009
    %1831 = vmatmul.f32.gmra.mxu0 %v1813
    %v1832 = vpop.f32.mrf.mxu0
    %v1833 = vadd.f32 0.0, %v1832
    %1834 = vdwg.mxu0
    %v1836 = vrot.slane %v1833, 1
    %v1837 = vrot.slane %v1833, 2
    %v1840 = vadd.f32 %v1004, %v1836
    %v1841 = vadd.f32 %v1007, %v1837
    %v1842 = vxor.u32 %v1840, 2147483648
    %v1843 = vxor.u32 %v1841, 2147483648
    %v1844 = vmul.f32 %v1842, 1.442695
    %v1845 = vpow.pop %v1844
    %v1846 = vmul.f32 %v1843, 1.442695
    %v1847 = vpow.pop %v1846
    %v1848 = vadd.f32 %v1845, 1.0
    %v1849 = vadd.f32 %v1847, 1.0
    %v1850 = vrcp.pop %v1848
    %v1851 = vmul.f32 %v1848, %v1850
    %v1852 = vsub.f32 1.0, %v1851
    %v1853 = vmul.f32 %v1850, %v1852
    %v1854 = vadd.f32 %v1850, %v1853
    %vm1855 = vweird.f32 %v1848
    %vm1856 = vweird.f32 %v1850
    %vm1857 = vmor %vm1855, %vm1856
    %v1858 = vsel %vm1857, %v1850, %v1854
    %v1859 = vand.u32 2147483647, %v1848
    %vm1860 = vcmp.eq.f32.partialorder %v1859, 8.507059e+37
    %v1861 = vand.u32 %v1848, 2147483648
    %v1862 = vor.u32 1.1754944e-38, %v1861
    %v1863 = vsel %vm1860, %v1862, %v1858
    %v1864 = vmul.f32 1.0, %v1863
    %v1865 = vrcp.pop %v1849
    %v1866 = vmul.f32 %v1849, %v1865
    %v1867 = vsub.f32 1.0, %v1866
    %v1868 = vmul.f32 %v1865, %v1867
    %v1869 = vadd.f32 %v1865, %v1868
    %vm1870 = vweird.f32 %v1849
    %vm1871 = vweird.f32 %v1865
    %vm1872 = vmor %vm1870, %vm1871
    %v1873 = vsel %vm1872, %v1865, %v1869
    %v1874 = vand.u32 2147483647, %v1849
    %vm1875 = vcmp.eq.f32.partialorder %v1874, 8.507059e+37
    %v1876 = vand.u32 %v1849, 2147483648
    %v1877 = vor.u32 1.1754944e-38, %v1876
    %v1878 = vsel %vm1875, %v1877, %v1873
    %v1879 = vmul.f32 1.0, %v1878
    %v1880 = vtanh.pop %v1840
    %v1881 = vtanh.pop %v1841
    %v1884 = vrot.slane %v1792, 7
    %v1885 = vrot.slane %v1793, 7
    %v1888 = vmul.f32 %v1864, %v1884
    %v1889 = vmul.f32 %v1879, %v1885
    %1892 = vrot.lane.b32.xlu0 %v1880, 64
    %v1893 = vpop.permute.xlu0 %1892
    %1894 = vrot.lane.b32.xlu0 %v1881, 64
    %v1895 = vpop.permute.xlu0 %1894
    %v1898 = vmul.f32 %v1864, %v1893
    %v1899 = vmul.f32 %v1879, %v1895
    %1902 = vrot.lane.b32.xlu0 %v1898, 32
    %v1903 = vpop.permute.xlu0 %1902
    %1904 = vrot.lane.b32.xlu0 %v1899, 32
    %v1905 = vpop.permute.xlu0 %1904
    %v1908 = vadd.f32 %v1888, %v1903
    %v1909 = vadd.f32 %v1889, %v1905
    %v1910 = vtanh.pop %v1908
    %v1911 = vtanh.pop %v1909
    %1914 = vrot.lane.b32.xlu0 %v1910, 64
    %v1915 = vpop.permute.xlu0 %1914
    %1916 = vrot.lane.b32.xlu0 %v1911, 64
    %v1917 = vpop.permute.xlu0 %1916
    %v1920 = vmul.f32 %v1864, %v1915
    %v1921 = vmul.f32 %v1879, %v1917
    %v1922 = vsel %vm947, %v1111, %v1225
    %v1923 = vsel %vm947, %v1112, %v1226
    %v1924 = vsel %vm950, %v1922, %v1340
    %v1925 = vsel %vm950, %v1923, %v1341
    %v1926 = vsel %vm953, %v1924, %v1456
    %v1927 = vsel %vm953, %v1925, %v1457
    %v1928 = vsel %vm956, %v1926, %v1572
    %v1929 = vsel %vm956, %v1927, %v1573
    %v1930 = vsel %vm959, %v1928, %v1688
    %v1931 = vsel %vm959, %v1929, %v1689
    %v1932 = vsel %vm962, %v1930, %v1804
    %v1933 = vsel %vm962, %v1931, %v1805
    %v1934 = vsel %vm965, %v1932, %v1920
    %v1935 = vsel %vm965, %v1933, %v1921
    %v1936 = vld [vmem:[%s5] sm:$0xff]
    %v1937 = vld [vmem:[%s5 + $0x8] sm:$0xff]
    %v1938 = vld [vmem:[%s5 + $0x10] sm:$0xff]
    %v1939 = vld [vmem:[%s5 + $0x18] sm:$0xff]
    %v1940 = vld [vmem:[%s6] sm:$0x1]
    %v1942 = vperm.slane %v1940, 0
    %1946 = vrot.lane.b32.xlu0 %v1934, 32
    %v1947 = vpop.permute.xlu0 %1946
    %1948 = vrot.lane.b32.xlu0 %v1935, 32
    %v1949 = vpop.permute.xlu0 %1948
    %v1950 = vsel %vm33, %v1947, 0
    %v1952 = vsel %vm33, %v1949, 0
    %1954 = vmatpush.msra.mxu0 0.0
    %1955 = vmatpush.msra.mxu0 0.0
    %1956 = vmatpush.msra.mxu0 0.0
    %1957 = vmatpush.msra.mxu0 0.0
    %1958 = vmatpush.msra.mxu0 0.0
    %1959 = vmatpush.msra.mxu0 0.0
    %1960 = vmatpush.msra.mxu0 0.0
    %1961 = vmatpush.msra.mxu0 0.0
    %1962 = vmatpush.msra.mxu0 0.0
    %1963 = vmatpush.msra.mxu0 0.0
    %1964 = vmatpush.msra.mxu0 0.0
    %1965 = vmatpush.msra.mxu0 0.0
    %1966 = vmatpush.msra.mxu0 %v1939
    %1967 = vmatpush.msra.mxu0 %v1938
    %1968 = vmatpush.msra.mxu0 %v1937
    %1969 = vmatpush.msra.mxu0 %v1936
    %1970 = vmatmul.f32.gmra.mxu0 %v1950
    %v1971 = vpop.f32.mrf.mxu0
    %v1972 = vadd.f32 %v1942, %v1971
    %1973 = vmatmul.f32.gmra.mxu0 %v1952
    %v1974 = vpop.f32.mrf.mxu0
    %v1975 = vadd.f32 %v1942, %v1974
    %1976 = vdwg.mxu0
    %1977 = vst [vmem:[#allocation2] sm:$0xff] %v1972
    %1978 = vst [vmem:[#allocation2 + $0x8] sm:$0xff] %v1975
    // Predicated region
    $region30: #{model_forward.1} parent=1 // pred_check
      _
    $region31: #{model_forward.1} parent=1 // pred_check_branch
      %1980 = sbr.rel (0) target = $region33
    $region32: #{model_forward.1} parent=1 // pred_region
      %1982 = vsyncadd [#allocation3], 0
      %s1983 = sshll.u32 [#allocation2], 4
      %s1984 = int_to_ptr.vmem [resolvable:$true] %s1983
      %s1985 = sshll.u32 %s7, 4
      %s1986 = int_to_ptr.hbm [resolvable:$true] %s1985
      %1991 = dma.vmem_to_hbm [thread:$0]  %s1984, 256, %s1986, [#allocation3], 128, 128, 8
    $region33: #{model_forward.1} parent=1 // pred_fallthru
      _
    // Predicated region
    $region34: #{model_forward.1} parent=1 // pred_check
      _
    $region35: #{model_forward.1} parent=1 // pred_check_branch
      %1993 = sbr.rel (0) target = $region37
    $region36: #{model_forward.1} parent=1 // pred_region
      %1995 = dma.done [#allocation3], 256
    $region37: #{model_forward.1} parent=1 // pred_fallthru
      _
    %1996 = vsyncpa [#allocation3], 1

</llo_original>
